<compile_context>
chip_gen: v7x
topology: tpu7x:2x2x1
jax: 0.10.0
libtpu: 0.0.40
codegen_flags: <defaults>
</compile_context>

<pallas_src>
import functools

import jax
import jax.numpy as jnp
from jax import lax
from jax.experimental import pallas as pl
from jax.experimental.pallas import tpu as pltpu


# -----------------------------------------------------------------------------
# Kernel: one (batch-block, time-chunk) tile per grid step.
# -----------------------------------------------------------------------------
def _lru_kernel(
    u_ref,        # (1, TT*BB, d_in)   input chunk, time-major within the block
    h0_ref,       # (1, BB, 2H)        initial hidden state, packed [re|im]
    lam_ref,      # (2 + 2*n_pows, 2H) rows 0,1 = lambda packed; 2k+2,2k+3 = lambda^(2^k)
    w_in_ref,     # (d_in, 2H)         [gamma*B_re.T | gamma*B_im.T]
    w_out_ref,    # (2H, d_out)        [[C_re.T], [-C_im.T]]
    d_t_ref,      # (d_in, d_out)      D.T
    y_ref,        # (1, TT*BB, d_out)  output chunk
    carry_ref,    # scratch (BB, 2H)   carried hidden state (packed)
    hh_ref=None,  # scratch (TT*BB, 2H) -- serial path only
    *,
    shifts,       # tuple of python ints: Hillis-Steele shifts (scan path)
    use_scan,
    unroll,
    mm_dtype,
):
    c = pl.program_id(1)
    BB, twoH = carry_ref.shape
    H = twoH // 2
    u_flat = u_ref[0]                       # (TT*BB, d_in)
    TT = u_flat.shape[0] // BB

    # One-time init of the carried state at the start of every batch block's
    # time sweep (scratch persists across grid iterations).
    @pl.when(c == 0)
    def _():
        carry_ref[...] = h0_ref[0]

    lam_a = lam_ref[0:1, :]                 # [ Re(lam) | Re(lam)]
    lam_b = lam_ref[1:2, :]                 # [-Im(lam) | Im(lam)]

    def pswap(x):
        # swap the re/im halves along the lane axis (packed complex "j*" trick)
        return jnp.concatenate([x[:, H:], x[:, :H]], axis=1)

    # ---- chunk entry: fused input projection (single MXU matmul, N = 2H) ----
    bu = jnp.dot(u_flat, w_in_ref[...], preferred_element_type=jnp.float32)

    if use_scan:
        # ---- log-depth Hillis-Steele scan over h_t = lam*h_{t-1} + bu_t ----
        # Fold the cross-chunk carry into bu_0:  bu'_0 = bu_0 + lam*carry.
        carry = carry_ref[...]
        head = bu[:BB, :] + carry * lam_a + pswap(carry) * lam_b
        if TT > 1:
            hh = jnp.concatenate([head, bu[BB:, :]], axis=0)
        else:
            hh = head
        for k, s in enumerate(shifts):                  # static python loop
            a_k = lam_ref[2 + 2 * k: 3 + 2 * k, :]      # [ Re(lam^s) | Re(lam^s)]
            b_k = lam_ref[3 + 2 * k: 4 + 2 * k, :]      # [-Im(lam^s) | Im(lam^s)]
            shifted = jnp.concatenate(
                [jnp.zeros((s * BB, twoH), jnp.float32),
                 hh[:(TT - s) * BB, :]], axis=0)
            hh = hh + shifted * a_k + pswap(shifted) * b_k
        carry_ref[...] = hh[(TT - 1) * BB:, :]
    else:
        # ---- packed serial recurrence: 1 load, 1 store, 2 mul, 2 add / step --
        hh_ref[...] = bu
        lam_ab = jnp.broadcast_to(lam_a, (BB, twoH))    # hoisted broadcasts
        lam_bb = jnp.broadcast_to(lam_b, (BB, twoH))

        def body(t, h):
            row = pl.multiple_of(t * BB, BB)            # 8-aligned sublane offset
            bu_t = hh_ref[pl.ds(row, BB), :]
            h_new = h * lam_ab + pswap(h) * lam_bb + bu_t
            hh_ref[pl.ds(row, BB), :] = h_new           # reuse BU slot for h_t
            return h_new

        carry_ref[...] = lax.fori_loop(0, TT, body, carry_ref[...],
                                       unroll=unroll)
        hh = hh_ref[...]

    # ---- chunk exit: fused output projection (2 MXU matmuls) ----
    # y = Re(h @ C.T) + u @ D.T = [h_re|h_im] @ [[C_re.T],[-C_im.T]] + u @ D.T
    y = (jnp.dot(hh.astype(mm_dtype), w_out_ref[...],
                 preferred_element_type=jnp.float32)
         + jnp.dot(u_flat, d_t_ref[...],
                   preferred_element_type=jnp.float32))
    y_ref[0] = y.astype(y_ref.dtype)


# -----------------------------------------------------------------------------
# Wrapper
# -----------------------------------------------------------------------------
def _round_up(x, m):
    return -(-x // m) * m


@functools.partial(
    jax.jit,
    static_argnames=("time_block", "batch_block", "matmul_dtype", "use_scan"))
def lru_forward(u, params, init_states=None, *, time_block=None,
                batch_block=None, matmul_dtype=jnp.float32, use_scan=None):
    """u: (B, T, d_in) float32  ->  (B, T, d_out) float32."""
    theta_log = params["theta_log"]
    nu_log = params["nu_log"]
    gamma_log = params["gamma_log"]
    B_re, B_im = params["B_re"], params["B_im"]
    C_re, C_im = params["C_re"], params["C_im"]
    D = params["D"]

    Bsz, T, d_in = u.shape
    H = theta_log.shape[0]
    d_out = D.shape[0]
    twoH = 2 * H
    mm_size = 2 if matmul_dtype == jnp.bfloat16 else 4

    # ---- static tiling choices (generation aware) ----
    Bp = _round_up(Bsz, 8)
    if batch_block is None:
        BB = Bp
    else:
        BB = min(_round_up(int(batch_block), 8), Bp)
    Bp = _round_up(Bp, BB)
    nb = Bp // BB

    try:
        phys_vmem = int(getattr(pltpu.get_tpu_info(), "vmem_capacity_bytes",
                                128 * 1024 * 1024))
    except Exception:
        phys_vmem = 128 * 1024 * 1024
    # ~64 MiB usable on v5e/v6e (128 MiB physical), ~38 MiB on v7x (64 MiB).
    vmem_budget = min(int(phys_vmem * 0.6), 64 * 1024 * 1024)

    # Scan vs serial: the scan wins when the per-step (BB, 2H) tile under-fills
    # the VPU/vregs (latency bound); the serial loop wins for large tiles.
    scan_tt_cap = max(8, ((128 * 1024) // (BB * twoH * 4)) // 8 * 8)
    if use_scan is None:
        use_scan_flag = (BB * twoH <= 4096) and scan_tt_cap >= 16
    else:
        use_scan_flag = bool(use_scan)

    # Weights are (conservatively) assumed double-buffered by the pipeline.
    weights_bytes = (2 * mm_size * (d_in * twoH + twoH * d_out + d_in * d_out)
                     + 4 * nb * BB * twoH + 64 * 1024)
    state_mult = 3 if use_scan_flag else 1

    def _chunk_bytes(tt):
        return (2 * tt * BB * d_in * mm_size      # input chunk, double buffered
                + 2 * tt * BB * d_out * 4         # output chunk, double buffered
                + state_mult * tt * BB * twoH * 4)  # packed hidden-state chunk

    T8 = _round_up(T, 8)
    if time_block is not None:
        TT = max(8, _round_up(int(time_block), 8))
    else:
        TT = min(T8, 1024)
        while TT > 8 and weights_bytes + _chunk_bytes(TT) > vmem_budget:
            TT -= 8
        if use_scan_flag:
            TT = min(TT, scan_tt_cap)
    num_chunks = -(-T // TT)
    T_pad = num_chunks * TT

    # Hillis-Steele shifts (empty when the serial path is used).
    n_passes = max(0, (TT - 1).bit_length()) if use_scan_flag else 0
    shifts = tuple(2 ** k for k in range(n_passes))

    # vreg-pressure guard for the serial unroll.
    unroll = max(1, min(8, TT, (32 * 1024) // max(1, BB * twoH * 4)))

    # ---- parameter prep: packed re|im weights (done once per call) ----
    phase = jnp.exp(theta_log)
    mag = jnp.exp(-jnp.exp(nu_log))
    lam_re = (mag * jnp.cos(phase)).astype(jnp.float32)
    lam_im = (mag * jnp.sin(phase)).astype(jnp.float32)
    rows = [jnp.concatenate([lam_re, lam_re]),
            jnp.concatenate([-lam_im, lam_im])]
    p_re, p_im = lam_re, lam_im
    for _ in range(n_passes):                      # lambda^(2^k) for the scan
        rows.append(jnp.concatenate([p_re, p_re]))
        rows.append(jnp.concatenate([-p_im, p_im]))
        p_re, p_im = p_re * p_re - p_im * p_im, 2.0 * p_re * p_im
    lam_tab = jnp.stack(rows, axis=0).astype(jnp.float32)   # (2+2K, 2H)

    # B_norm uses gamma_log directly (matches the PyTorch module, NOT exp()).
    bn_re = gamma_log[:, None] * B_re              # (H, d_in)
    bn_im = gamma_log[:, None] * B_im
    w_in = jnp.concatenate([bn_re.T, bn_im.T], axis=1).astype(matmul_dtype)
    w_out = jnp.concatenate([C_re.T, -C_im.T], axis=0).astype(matmul_dtype)
    d_t = D.T.astype(matmul_dtype)

    # ---- initial hidden state, packed [re|im], padded & split by batch block --
    if init_states is None:
        h0 = jnp.zeros((nb, BB, twoH), jnp.float32)
    else:
        if init_states.ndim == 1:
            init_states = init_states[None, :]
        init_states = jnp.broadcast_to(init_states, (Bsz, H))
        h0 = jnp.concatenate(
            [jnp.real(init_states), jnp.imag(init_states)],
            axis=1).astype(jnp.float32)
        h0 = jnp.pad(h0, ((0, Bp - Bsz), (0, 0))).reshape(nb, BB, twoH)

    # ---- input: time-major within each batch block, flat 2-D per block ----
    u_tm = jnp.transpose(u.astype(matmul_dtype), (1, 0, 2))     # (T, B, d_in)
    u_tm = jnp.pad(u_tm, ((0, T_pad - T), (0, Bp - Bsz), (0, 0)))
    u3 = (u_tm.reshape(T_pad, nb, BB, d_in)
          .transpose(1, 0, 2, 3)
          .reshape(nb, T_pad * BB, d_in))                       # row = t*BB + b

    full2 = lambda shape: pl.BlockSpec(shape, lambda b, c: (0, 0))

    scratch = [pltpu.VMEM((BB, twoH), jnp.float32)]             # packed carry
    if not use_scan_flag:
        scratch.append(pltpu.VMEM((TT * BB, twoH), jnp.float32))  # BU / H chunk

    kernel = functools.partial(
        _lru_kernel, shifts=shifts, use_scan=use_scan_flag,
        unroll=unroll, mm_dtype=matmul_dtype)

    y3 = pl.pallas_call(
        kernel,
        out_shape=jax.ShapeDtypeStruct((nb, T_pad * BB, d_out), jnp.float32),
        grid_spec=pltpu.PrefetchScalarGridSpec(
            num_scalar_prefetch=0,
            grid=(nb, num_chunks),                 # batch outer, time inner
            in_specs=[
                pl.BlockSpec((1, TT * BB, d_in), lambda b, c: (b, c, 0)),  # u
                pl.BlockSpec((1, BB, twoH), lambda b, c: (b, 0, 0)),       # h0
                full2(lam_tab.shape),                                      # lambda (+powers)
                full2((d_in, twoH)),                                       # W_in
                full2((twoH, d_out)),                                      # W_out
                full2((d_in, d_out)),                                      # D.T
            ],
            out_specs=pl.BlockSpec((1, TT * BB, d_out),
                                   lambda b, c: (b, c, 0)),
            scratch_shapes=scratch,
        ),
        compiler_params=pltpu.CompilerParams(
            dimension_semantics=("parallel", "arbitrary"),
            vmem_limit_bytes=vmem_budget,
        ),
    )(u3, h0, lam_tab, w_in, w_out, d_t)

    y = (y3.reshape(nb, T_pad, BB, d_out)
         .transpose(1, 0, 2, 3)
         .reshape(T_pad, Bp, d_out)[:T, :Bsz])
    return jnp.transpose(y, (1, 0, 2))             # (B, T, d_out)


# -----------------------------------------------------------------------------
# Deterministic parameter init (mirrors LRU._init_params semantics)
# -----------------------------------------------------------------------------
def init_lru_params(key, d_in, d_hidden, d_out,
                    r_min=0.0, r_max=1.0, max_phase=6.28):
    ks = jax.random.split(key, 7)
    theta_log = jax.random.uniform(ks[0], (d_hidden,), minval=0.0,
                                   maxval=max_phase)
    u = jax.random.uniform(ks[1], (d_hidden,))
    nu_log = jnp.log(-0.5 * jnp.log(u * (r_max**2 - r_min**2) + r_min**2))
    lam_abs2 = jnp.exp(-2.0 * jnp.exp(nu_log))
    gamma_log = jnp.log(jnp.sqrt(1.0 - lam_abs2))

    def xavier_normal(k, shape):
        fan_out, fan_in = shape
        std = jnp.sqrt(2.0 / (fan_in + fan_out))
        return std * jax.random.normal(k, shape, dtype=jnp.float32)

    return {
        "theta_log": theta_log.astype(jnp.float32),
        "nu_log": nu_log.astype(jnp.float32),
        "gamma_log": gamma_log.astype(jnp.float32),
        "B_re": xavier_normal(ks[2], (d_hidden, d_in)),
        "B_im": xavier_normal(ks[3], (d_hidden, d_in)),
        "C_re": xavier_normal(ks[4], (d_out, d_hidden)),
        "C_im": xavier_normal(ks[5], (d_out, d_hidden)),
        "D": xavier_normal(ks[6], (d_out, d_in)),
    }


# -----------------------------------------------------------------------------
# Pure-JAX reference (for correctness check)
# -----------------------------------------------------------------------------
def lru_reference(u, params):
    theta_log, nu_log, gamma_log = (params["theta_log"], params["nu_log"],
                                    params["gamma_log"])
    diag_lambda = jnp.exp(-jnp.exp(nu_log) + 1j * jnp.exp(theta_log))
    B_norm = (gamma_log[:, None]).astype(jnp.complex64) * (
        params["B_re"] + 1j * params["B_im"])
    C = params["C_re"] + 1j * params["C_im"]
    D = params["D"]
    Bsz, T, _ = u.shape
    h = jnp.zeros((Bsz, diag_lambda.shape[0]), jnp.complex64)

    def step(h, u_t):
        h = h * diag_lambda + u_t.astype(jnp.complex64) @ B_norm.T
        y = jnp.real(h @ C.T) + u_t @ D.T
        return h, y

    _, ys = jax.lax.scan(step, h, jnp.transpose(u, (1, 0, 2)))
    return jnp.transpose(ys, (1, 0, 2))


if __name__ == "__main__":
    d_in, d_hidden, d_out = 4, 32, 8
    Bsz, T = 2, 20

    key = jax.random.PRNGKey(0)
    pkey, ukey, u2key = jax.random.split(key, 3)
    params = init_lru_params(pkey, d_in, d_hidden, d_out)
    u = jax.random.normal(ukey, (Bsz, T, d_in), dtype=jnp.float32)

    y_ref = lru_reference(u, params)

    # 1) auto tiling: single chunk, log-depth scan path.
    y_auto = lru_forward(u, params)
    jax.block_until_ready(y_auto)
    assert y_auto.shape == (Bsz, T, d_out)
    assert jnp.allclose(y_auto, y_ref, atol=2e-4, rtol=2e-4), (
        f"auto max abs err {jnp.max(jnp.abs(y_auto - y_ref))}")

    # 2) multi-chunk (TT=8 -> 3 chunks): cross-chunk carry + time padding.
    y_multi = lru_forward(u, params, time_block=8)
    jax.block_until_ready(y_multi)
    assert jnp.allclose(y_multi, y_ref, atol=2e-4, rtol=2e-4), (
        f"multi-chunk max abs err {jnp.max(jnp.abs(y_multi - y_ref))}")

    # 3) packed serial fallback path.
    y_serial = lru_forward(u, params, time_block=8, use_scan=False)
    jax.block_until_ready(y_serial)
    assert jnp.allclose(y_serial, y_ref, atol=2e-4, rtol=2e-4), (
        f"serial max abs err {jnp.max(jnp.abs(y_serial - y_ref))}")

    # 4) batch-parallel grid axis (2 batch blocks -> feeds v7x's 2nd core).
    u_big = jax.random.normal(u2key, (16, T, d_in), dtype=jnp.float32)
    y_big_ref = lru_reference(u_big, params)
    y_big = lru_forward(u_big, params, time_block=8, batch_block=8)
    jax.block_until_ready(y_big)
    assert jnp.allclose(y_big, y_big_ref, atol=2e-4, rtol=2e-4), (
        f"batch-block max abs err {jnp.max(jnp.abs(y_big - y_big_ref))}")

    # 5) bf16 matmul operands (recurrence stays f32) -> loose tolerance.
    y_bf16 = lru_forward(u, params, matmul_dtype=jnp.bfloat16)
    jax.block_until_ready(y_bf16)
    assert jnp.allclose(y_bf16, y_ref, atol=1e-1, rtol=1e-1), (
        f"bf16 max abs err {jnp.max(jnp.abs(y_bf16 - y_ref))}")

    print("KERNEL_OK")
</pallas_src>

<mosaic_0001>
module attributes {stable_mosaic.version = 11 : i64} {
  func.func @_lru_kernel(%arg0: i32, %arg1: i32, %arg2: memref<1x192x4xf32, #tpu.memory_space<vmem>>, %arg3: memref<1x8x64xf32, #tpu.memory_space<vmem>>, %arg4: memref<12x64xf32, #tpu.memory_space<vmem>>, %arg5: memref<4x64xf32, #tpu.memory_space<vmem>>, %arg6: memref<64x8xf32, #tpu.memory_space<vmem>>, %arg7: memref<4x8xf32, #tpu.memory_space<vmem>>, %arg8: memref<1x192x8xf32, #tpu.memory_space<vmem>>, %arg9: memref<8x64xf32, #tpu.memory_space<vmem>>) attributes {dimension_semantics = [#tpu.dimension_semantics<parallel>, #tpu.dimension_semantics<arbitrary>], iteration_bounds = array<i64: 1, 1>, scalar_prefetch = 0 : i64, scratch_operands = 1 : i64, tpu.core_type = #tpu.core_type<tc>, window_params = [{transform_indices = @transform_0, window_bounds = array<i64: 1, 192, 4>}, {transform_indices = @transform_1, window_bounds = array<i64: 1, 8, 64>}, {pipeline_mode = #tpu.pipeline_mode<synchronous>, transform_indices = @transform_2, window_bounds = array<i64: 12, 64>}, {pipeline_mode = #tpu.pipeline_mode<synchronous>, transform_indices = @transform_3, window_bounds = array<i64: 4, 64>}, {pipeline_mode = #tpu.pipeline_mode<synchronous>, transform_indices = @transform_4, window_bounds = array<i64: 64, 8>}, {pipeline_mode = #tpu.pipeline_mode<synchronous>, transform_indices = @transform_5, window_bounds = array<i64: 4, 8>}, {transform_indices = @transform_6, window_bounds = array<i64: 1, 192, 8>}]} {
    %c0 = arith.constant 0 : index
    %c0_0 = arith.constant 0 : index
    %c0_1 = arith.constant 0 : index
    %0 = vector.load %arg2[%c0, %c0_0, %c0_1] : memref<1x192x4xf32, #tpu.memory_space<vmem>>, vector<1x192x4xf32>
    %1 = vector.shape_cast %0 : vector<1x192x4xf32> to vector<192x4xf32>
    %c0_i32 = arith.constant 0 : i32
    %2 = arith.cmpi eq, %arg1, %c0_i32 : i32
    %3 = arith.extui %2 : i1 to i32
    %c0_i32_2 = arith.constant 0 : i32
    %4 = arith.cmpi ne, %3, %c0_i32_2 : i32
    scf.if %4 {
      %c0_36 = arith.constant 0 : index
      %c0_37 = arith.constant 0 : index
      %c0_38 = arith.constant 0 : index
      %102 = vector.load %arg3[%c0_36, %c0_37, %c0_38] : memref<1x8x64xf32, #tpu.memory_space<vmem>>, vector<1x8x64xf32>
      %103 = vector.shape_cast %102 : vector<1x8x64xf32> to vector<8x64xf32>
      %c0_39 = arith.constant 0 : index
      %c0_40 = arith.constant 0 : index
      %104 = vector.load %arg9[%c0_39, %c0_40] : memref<8x64xf32, #tpu.memory_space<vmem>>, vector<8x64xf32>
      tpu.vector_store %arg9[%c0_39, %c0_40], %103 {strides = array<i32>} : memref<8x64xf32, #tpu.memory_space<vmem>>, vector<8x64xf32>,
    } else {
    }
    %c0_3 = arith.constant 0 : index
    %c0_4 = arith.constant 0 : index
    %5 = vector.load %arg4[%c0_3, %c0_4] : memref<12x64xf32, #tpu.memory_space<vmem>>, vector<1x64xf32>
    %c1 = arith.constant 1 : index
    %c0_5 = arith.constant 0 : index
    %6 = vector.load %arg4[%c1, %c0_5] : memref<12x64xf32, #tpu.memory_space<vmem>>, vector<1x64xf32>
    %c0_6 = arith.constant 0 : index
    %c0_7 = arith.constant 0 : index
    %7 = vector.load %arg5[%c0_6, %c0_7] : memref<4x64xf32, #tpu.memory_space<vmem>>, vector<4x64xf32>
    %cst = arith.constant dense<0.000000e+00> : vector<192x64xf32>
    %8 = tpu.matmul %1, %7, %cst {dimension_numbers = #tpu.dot_dimension_numbers<[1], [0], [0], [1], [0, 0, 1, 1], [], []>} : vector<192x4xf32>, vector<4x64xf32>, vector<192x64xf32> -> vector<192x64xf32>
    %c0_8 = arith.constant 0 : index
    %c0_9 = arith.constant 0 : index
    %9 = vector.load %arg9[%c0_8, %c0_9] : memref<8x64xf32, #tpu.memory_space<vmem>>, vector<8x64xf32>
    %10 = vector.extract_strided_slice %8 {offsets = [0, 0], sizes = [8, 64], strides = [1, 1]} : vector<192x64xf32> to vector<8x64xf32>
    %11 = vector.broadcast %5 : vector<1x64xf32> to vector<8x64xf32>
    %12 = arith.mulf %9, %11 : vector<8x64xf32>
    %13 = arith.addf %10, %12 : vector<8x64xf32>
    %14 = vector.extract_strided_slice %9 {offsets = [0, 32], sizes = [8, 32], strides = [1, 1]} : vector<8x64xf32> to vector<8x32xf32>
    %15 = vector.extract_strided_slice %9 {offsets = [0, 0], sizes = [8, 32], strides = [1, 1]} : vector<8x64xf32> to vector<8x32xf32>
    %16 = tpu.concatenate %14, %15 in 1 : vector<8x32xf32>, vector<8x32xf32> -> vector<8x64xf32>
    %17 = vector.broadcast %6 : vector<1x64xf32> to vector<8x64xf32>
    %18 = arith.mulf %16, %17 : vector<8x64xf32>
    %19 = arith.addf %13, %18 : vector<8x64xf32>
    %20 = vector.extract_strided_slice %8 {offsets = [8, 0], sizes = [184, 64], strides = [1, 1]} : vector<192x64xf32> to vector<184x64xf32>
    %21 = tpu.concatenate %19, %20 in 0 : vector<8x64xf32>, vector<184x64xf32> -> vector<192x64xf32>
    %c2 = arith.constant 2 : index
    %c0_10 = arith.constant 0 : index
    %22 = vector.load %arg4[%c2, %c0_10] : memref<12x64xf32, #tpu.memory_space<vmem>>, vector<1x64xf32>
    %c3 = arith.constant 3 : index
    %c0_11 = arith.constant 0 : index
    %23 = vector.load %arg4[%c3, %c0_11] : memref<12x64xf32, #tpu.memory_space<vmem>>, vector<1x64xf32>
    %cst_12 = arith.constant 0.000000e+00 : f32
    %24 = vector.broadcast %cst_12 : f32 to vector<8x64xf32>
    %25 = vector.extract_strided_slice %21 {offsets = [0, 0], sizes = [184, 64], strides = [1, 1]} : vector<192x64xf32> to vector<184x64xf32>
    %26 = tpu.concatenate %24, %25 in 0 : vector<8x64xf32>, vector<184x64xf32> -> vector<192x64xf32>
    %27 = vector.broadcast %22 : vector<1x64xf32> to vector<192x64xf32>
    %28 = arith.mulf %26, %27 : vector<192x64xf32>
    %29 = arith.addf %21, %28 : vector<192x64xf32>
    %30 = vector.extract_strided_slice %26 {offsets = [0, 32], sizes = [192, 32], strides = [1, 1]} : vector<192x64xf32> to vector<192x32xf32>
    %31 = vector.extract_strided_slice %26 {offsets = [0, 0], sizes = [192, 32], strides = [1, 1]} : vector<192x64xf32> to vector<192x32xf32>
    %32 = tpu.concatenate %30, %31 in 1 : vector<192x32xf32>, vector<192x32xf32> -> vector<192x64xf32>
    %33 = vector.broadcast %23 : vector<1x64xf32> to vector<192x64xf32>
    %34 = arith.mulf %32, %33 : vector<192x64xf32>
    %35 = arith.addf %29, %34 : vector<192x64xf32>
    %c4 = arith.constant 4 : index
    %c0_13 = arith.constant 0 : index
    %36 = vector.load %arg4[%c4, %c0_13] : memref<12x64xf32, #tpu.memory_space<vmem>>, vector<1x64xf32>
    %c5 = arith.constant 5 : index
    %c0_14 = arith.constant 0 : index
    %37 = vector.load %arg4[%c5, %c0_14] : memref<12x64xf32, #tpu.memory_space<vmem>>, vector<1x64xf32>
    %cst_15 = arith.constant 0.000000e+00 : f32
    %38 = vector.broadcast %cst_15 : f32 to vector<16x64xf32>
    %39 = vector.extract_strided_slice %35 {offsets = [0, 0], sizes = [176, 64], strides = [1, 1]} : vector<192x64xf32> to vector<176x64xf32>
    %40 = tpu.concatenate %38, %39 in 0 : vector<16x64xf32>, vector<176x64xf32> -> vector<192x64xf32>
    %41 = vector.broadcast %36 : vector<1x64xf32> to vector<192x64xf32>
    %42 = arith.mulf %40, %41 : vector<192x64xf32>
    %43 = arith.addf %35, %42 : vector<192x64xf32>
    %44 = vector.extract_strided_slice %40 {offsets = [0, 32], sizes = [192, 32], strides = [1, 1]} : vector<192x64xf32> to vector<192x32xf32>
    %45 = vector.extract_strided_slice %40 {offsets = [0, 0], sizes = [192, 32], strides = [1, 1]} : vector<192x64xf32> to vector<192x32xf32>
    %46 = tpu.concatenate %44, %45 in 1 : vector<192x32xf32>, vector<192x32xf32> -> vector<192x64xf32>
    %47 = vector.broadcast %37 : vector<1x64xf32> to vector<192x64xf32>
    %48 = arith.mulf %46, %47 : vector<192x64xf32>
    %49 = arith.addf %43, %48 : vector<192x64xf32>
    %c6 = arith.constant 6 : index
    %c0_16 = arith.constant 0 : index
    %50 = vector.load %arg4[%c6, %c0_16] : memref<12x64xf32, #tpu.memory_space<vmem>>, vector<1x64xf32>
    %c7 = arith.constant 7 : index
    %c0_17 = arith.constant 0 : index
    %51 = vector.load %arg4[%c7, %c0_17] : memref<12x64xf32, #tpu.memory_space<vmem>>, vector<1x64xf32>
    %cst_18 = arith.constant 0.000000e+00 : f32
    %52 = vector.broadcast %cst_18 : f32 to vector<32x64xf32>
    %53 = vector.extract_strided_slice %49 {offsets = [0, 0], sizes = [160, 64], strides = [1, 1]} : vector<192x64xf32> to vector<160x64xf32>
    %54 = tpu.concatenate %52, %53 in 0 : vector<32x64xf32>, vector<160x64xf32> -> vector<192x64xf32>
    %55 = vector.broadcast %50 : vector<1x64xf32> to vector<192x64xf32>
    %56 = arith.mulf %54, %55 : vector<192x64xf32>
    %57 = arith.addf %49, %56 : vector<192x64xf32>
    %58 = vector.extract_strided_slice %54 {offsets = [0, 32], sizes = [192, 32], strides = [1, 1]} : vector<192x64xf32> to vector<192x32xf32>
    %59 = vector.extract_strided_slice %54 {offsets = [0, 0], sizes = [192, 32], strides = [1, 1]} : vector<192x64xf32> to vector<192x32xf32>
    %60 = tpu.concatenate %58, %59 in 1 : vector<192x32xf32>, vector<192x32xf32> -> vector<192x64xf32>
    %61 = vector.broadcast %51 : vector<1x64xf32> to vector<192x64xf32>
    %62 = arith.mulf %60, %61 : vector<192x64xf32>
    %63 = arith.addf %57, %62 : vector<192x64xf32>
    %c8 = arith.constant 8 : index
    %c0_19 = arith.constant 0 : index
    %64 = vector.load %arg4[%c8, %c0_19] : memref<12x64xf32, #tpu.memory_space<vmem>>, vector<1x64xf32>
    %c9 = arith.constant 9 : index
    %c0_20 = arith.constant 0 : index
    %65 = vector.load %arg4[%c9, %c0_20] : memref<12x64xf32, #tpu.memory_space<vmem>>, vector<1x64xf32>
    %cst_21 = arith.constant 0.000000e+00 : f32
    %66 = vector.broadcast %cst_21 : f32 to vector<64x64xf32>
    %67 = vector.extract_strided_slice %63 {offsets = [0, 0], sizes = [128, 64], strides = [1, 1]} : vector<192x64xf32> to vector<128x64xf32>
    %68 = tpu.concatenate %66, %67 in 0 : vector<64x64xf32>, vector<128x64xf32> -> vector<192x64xf32>
    %69 = vector.broadcast %64 : vector<1x64xf32> to vector<192x64xf32>
    %70 = arith.mulf %68, %69 : vector<192x64xf32>
    %71 = arith.addf %63, %70 : vector<192x64xf32>
    %72 = vector.extract_strided_slice %68 {offsets = [0, 32], sizes = [192, 32], strides = [1, 1]} : vector<192x64xf32> to vector<192x32xf32>
    %73 = vector.extract_strided_slice %68 {offsets = [0, 0], sizes = [192, 32], strides = [1, 1]} : vector<192x64xf32> to vector<192x32xf32>
    %74 = tpu.concatenate %72, %73 in 1 : vector<192x32xf32>, vector<192x32xf32> -> vector<192x64xf32>
    %75 = vector.broadcast %65 : vector<1x64xf32> to vector<192x64xf32>
    %76 = arith.mulf %74, %75 : vector<192x64xf32>
    %77 = arith.addf %71, %76 : vector<192x64xf32>
    %c10 = arith.constant 10 : index
    %c0_22 = arith.constant 0 : index
    %78 = vector.load %arg4[%c10, %c0_22] : memref<12x64xf32, #tpu.memory_space<vmem>>, vector<1x64xf32>
    %c11 = arith.constant 11 : index
    %c0_23 = arith.constant 0 : index
    %79 = vector.load %arg4[%c11, %c0_23] : memref<12x64xf32, #tpu.memory_space<vmem>>, vector<1x64xf32>
    %cst_24 = arith.constant 0.000000e+00 : f32
    %80 = vector.broadcast %cst_24 : f32 to vector<128x64xf32>
    %81 = vector.extract_strided_slice %77 {offsets = [0, 0], sizes = [64, 64], strides = [1, 1]} : vector<192x64xf32> to vector<64x64xf32>
    %82 = tpu.concatenate %80, %81 in 0 : vector<128x64xf32>, vector<64x64xf32> -> vector<192x64xf32>
    %83 = vector.broadcast %78 : vector<1x64xf32> to vector<192x64xf32>
    %84 = arith.mulf %82, %83 : vector<192x64xf32>
    %85 = arith.addf %77, %84 : vector<192x64xf32>
    %86 = vector.extract_strided_slice %82 {offsets = [0, 32], sizes = [192, 32], strides = [1, 1]} : vector<192x64xf32> to vector<192x32xf32>
    %87 = vector.extract_strided_slice %82 {offsets = [0, 0], sizes = [192, 32], strides = [1, 1]} : vector<192x64xf32> to vector<192x32xf32>
    %88 = tpu.concatenate %86, %87 in 1 : vector<192x32xf32>, vector<192x32xf32> -> vector<192x64xf32>
    %89 = vector.broadcast %79 : vector<1x64xf32> to vector<192x64xf32>
    %90 = arith.mulf %88, %89 : vector<192x64xf32>
    %91 = arith.addf %85, %90 : vector<192x64xf32>
    %92 = vector.extract_strided_slice %91 {offsets = [184, 0], sizes = [8, 64], strides = [1, 1]} : vector<192x64xf32> to vector<8x64xf32>
    %c0_25 = arith.constant 0 : index
    %c0_26 = arith.constant 0 : index
    %93 = vector.load %arg9[%c0_25, %c0_26] : memref<8x64xf32, #tpu.memory_space<vmem>>, vector<8x64xf32>
    tpu.vector_store %arg9[%c0_25, %c0_26], %92 {strides = array<i32>} : memref<8x64xf32, #tpu.memory_space<vmem>>, vector<8x64xf32>,
    %c0_27 = arith.constant 0 : index
    %c0_28 = arith.constant 0 : index
    %94 = vector.load %arg6[%c0_27, %c0_28] : memref<64x8xf32, #tpu.memory_space<vmem>>, vector<64x8xf32>
    %cst_29 = arith.constant dense<0.000000e+00> : vector<192x8xf32>
    %95 = tpu.matmul %91, %94, %cst_29 {dimension_numbers = #tpu.dot_dimension_numbers<[1], [0], [0], [1], [0, 0, 1, 1], [], []>} : vector<192x64xf32>, vector<64x8xf32>, vector<192x8xf32> -> vector<192x8xf32>
    %c0_30 = arith.constant 0 : index
    %c0_31 = arith.constant 0 : index
    %96 = vector.load %arg7[%c0_30, %c0_31] : memref<4x8xf32, #tpu.memory_space<vmem>>, vector<4x8xf32>
    %cst_32 = arith.constant dense<0.000000e+00> : vector<192x8xf32>
    %97 = tpu.matmul %1, %96, %cst_32 {dimension_numbers = #tpu.dot_dimension_numbers<[1], [0], [0], [1], [0, 0, 1, 1], [], []>} : vector<192x4xf32>, vector<4x8xf32>, vector<192x8xf32> -> vector<192x8xf32>
    %98 = arith.addf %95, %97 : vector<192x8xf32>
    %c0_33 = arith.constant 0 : index
    %c0_34 = arith.constant 0 : index
    %c0_35 = arith.constant 0 : index
    %99 = vector.load %arg8[%c0_33, %c0_34, %c0_35] : memref<1x192x8xf32, #tpu.memory_space<vmem>>, vector<1x192x8xf32>
    %100 = vector.shape_cast %99 : vector<1x192x8xf32> to vector<192x8xf32>
    %101 = vector.shape_cast %98 : vector<192x8xf32> to vector<1x192x8xf32>
    tpu.vector_store %arg8[%c0_33, %c0_34, %c0_35], %101 {strides = array<i32>} : memref<1x192x8xf32, #tpu.memory_space<vmem>>, vector<1x192x8xf32>,
    return
  }
  func.func @transform_0(%arg0: i32, %arg1: i32) -> (i32, i32, i32) {
    %c0_i32 = arith.constant 0 : i32
    %c0_i32_0 = arith.constant 0 : i32
    return %arg0, %arg1, %c0_i32 : i32, i32, i32
  }
  func.func @transform_1(%arg0: i32, %arg1: i32) -> (i32, i32, i32) {
    %c0_i32 = arith.constant 0 : i32
    %c0_i32_0 = arith.constant 0 : i32
    %c0_i32_1 = arith.constant 0 : i32
    return %arg0, %c0_i32, %c0_i32_0 : i32, i32, i32
  }
  func.func @transform_2(%arg0: i32, %arg1: i32) -> (i32, i32) {
    %c0_i32 = arith.constant 0 : i32
    %c0_i32_0 = arith.constant 0 : i32
    %c0_i32_1 = arith.constant 0 : i32
    return %c0_i32, %c0_i32_0 : i32, i32
  }
  func.func @transform_3(%arg0: i32, %arg1: i32) -> (i32, i32) {
    %c0_i32 = arith.constant 0 : i32
    %c0_i32_0 = arith.constant 0 : i32
    %c0_i32_1 = arith.constant 0 : i32
    return %c0_i32, %c0_i32_0 : i32, i32
  }
  func.func @transform_4(%arg0: i32, %arg1: i32) -> (i32, i32) {
    %c0_i32 = arith.constant 0 : i32
    %c0_i32_0 = arith.constant 0 : i32
    %c0_i32_1 = arith.constant 0 : i32
    return %c0_i32, %c0_i32_0 : i32, i32
  }
  func.func @transform_5(%arg0: i32, %arg1: i32) -> (i32, i32) {
    %c0_i32 = arith.constant 0 : i32
    %c0_i32_0 = arith.constant 0 : i32
    %c0_i32_1 = arith.constant 0 : i32
    return %c0_i32, %c0_i32_0 : i32, i32
  }
  func.func @transform_6(%arg0: i32, %arg1: i32) -> (i32, i32, i32) {
    %c0_i32 = arith.constant 0 : i32
    %c0_i32_0 = arith.constant 0 : i32
    return %arg0, %arg1, %c0_i32 : i32, i32, i32
  }
}

</mosaic_0001>

<llo_original>
// kernel: neg.12
$region0: #{neg.12}
  #allocation0 [shape = 's32[1]{0}', space=sflag, size = 0x4, scoped, tag = 'scoped memory for neg.12']
  %s0 = inlined_call_operand.vmem [shape: f32[32], index: 0, kind: input, shape index: {}]
  %s1 = inlined_call_operand.vmem [shape: f32[32], index: 1, kind: output, shape index: {}]
  %v2 = vld [vmem:[%s0] sm:$0x1]
  %3 = xla_tuple %v2
  %4 = xla_tuple %3
  %v5 = vxor.u32 %v2, 2147483648
  %6 = xla_tuple %v5
  %7 = vst [vmem:[%s1] sm:$0x1] %v5

// kernel: lru_forward.1
$region0: #{lru_forward.1}
  #allocation0 [shape = 'u32[]', space=smem, size = 0x4, offset = 0x4, fixed_abs, tag = 'smem constant byte address 0x4 - core index']
  #allocation1 [shape = 'u32[144,128]{1,0:T(1,128)}', space=vmem, size = 0x12000, scoped, tag = 'internal scratch']
  #allocation2 [shape = 'f32[8,64]{1,0:T(8,128)}', space=vmem, size = 0x1000, scoped, tag = 'scratch operand']
  %s0 = inlined_call_operand.hbm [shape: f32[1,192,4], index: 0, kind: input, shape index: {}]
  %s1 = inlined_call_operand.hbm [shape: f32[1,8,64], index: 1, kind: input, shape index: {}]
  %s2 = inlined_call_operand.hbm [shape: f32[12,64], index: 2, kind: input, shape index: {}]
  %s3 = inlined_call_operand.hbm [shape: f32[4,64], index: 3, kind: input, shape index: {}]
  %s4 = inlined_call_operand.hbm [shape: f32[64,8], index: 4, kind: input, shape index: {}]
  %s5 = inlined_call_operand.hbm [shape: f32[4,8], index: 5, kind: input, shape index: {}]
  %s6 = inlined_call_operand.hbm [shape: f32[1,192,8], index: 6, kind: output, shape index: {}]
  %s7 = sld [smem:[#allocation0]]
  $region62: #{lru_forward.1} parent=0
    _
  %s9 = ssub.s32 1, %s7
  %s10 = scalar_select 0, %s9, %s7
  $region1: #{lru_forward.1} parent=0
    #allocation3 [shape = 'u8[98304]{0}', space=vmem, size = 0x18000, scoped, tag = 'input window, operand 0, single buffered']
    #allocation4 [shape = 's32[1]{0}', space=sflag, size = 0x4, scoped, tag = 'scoped memory for lru_forward.1']
    #allocation5 [shape = 's32[1]{0}', space=sflag, size = 0x4, scoped, tag = 'scoped memory for lru_forward.1']
    #allocation6 [shape = 'u8[4096]{0}', space=vmem, size = 0x1000, scoped, tag = 'input window, operand 1, single buffered']
    #allocation7 [shape = 's32[1]{0}', space=sflag, size = 0x4, scoped, tag = 'scoped memory for lru_forward.1']
    #allocation8 [shape = 'u8[8192]{0}', space=vmem, size = 0x2000, scoped, tag = 'input window, operand 2, single buffered']
    #allocation9 [shape = 'u8[2048]{0}', space=vmem, size = 0x800, scoped, tag = 'input window, operand 3, single buffered']
    #allocation10 [shape = 's32[1]{0}', space=sflag, size = 0x4, scoped, tag = 'scoped memory for lru_forward.1']
    #allocation11 [shape = 'u8[32768]{0}', space=vmem, size = 0x8000, scoped, tag = 'input window, operand 4, single buffered']
    #allocation12 [shape = 'u8[2048]{0}', space=vmem, size = 0x800, scoped, tag = 'input window, operand 5, single buffered']
    #allocation13 [shape = 's32[1]{0}', space=sflag, size = 0x4, scoped, tag = 'scoped memory for lru_forward.1']
    #allocation14 [shape = 'u8[98304]{0}', space=vmem, size = 0x18000, scoped, tag = 'output window, operand 0, single buffered']
    %11 = vsyncpa [#allocation4], 0
    %12 = vsyncpa [#allocation7], 0
    %13 = vsyncpa [#allocation10], 0
    %14 = vsyncpa [#allocation13], 0
    %15 = vsyncpa [#allocation5], 0
    // Predicated region
    $region2: #{lru_forward.1} parent=1 // pred_check
      _
    $region3: #{lru_forward.1} parent=1 // pred_check_branch
      %17 = sbr.rel (0) target = $region5
    $region4: #{lru_forward.1} parent=1 // pred_region
      %s19 = ssub.s32 3072, 3072
      %20 = vsyncadd [#allocation4], %s19
      %s21 = sshll.u32 [#allocation3], 4
      %s22 = int_to_ptr.vmem [resolvable:$true] %s21
      %27 = dma.hbm_to_vmem [thread:$0]  %s0, 3072, %s22, [#allocation4], 128, 128, 8
    $region5: #{lru_forward.1} parent=1 // pred_fallthru
      _
    // Predicated region
    $region6: #{lru_forward.1} parent=1 // pred_check
      _
    $region7: #{lru_forward.1} parent=1 // pred_check_branch
      %29 = sbr.rel (0) target = $region9
    $region8: #{lru_forward.1} parent=1 // pred_region
      %s31 = ssub.s32 128, 128
      %32 = vsyncadd [#allocation7], %s31
      %s34 = sshll.u32 [#allocation6], 4
      %s35 = int_to_ptr.vmem [resolvable:$true] %s34
      %37 = dma.hbm_to_vmem [thread:$0]  %s1, 128, %s35, [#allocation7]
    $region9: #{lru_forward.1} parent=1 // pred_fallthru
      _
    // Predicated region
    $region10: #{lru_forward.1} parent=1 // pred_check
      _
    $region11: #{lru_forward.1} parent=1 // pred_check_branch
      %39 = sbr.rel (0) target = $region13
    $region12: #{lru_forward.1} parent=1 // pred_region
      %s41 = ssub.s32 256, 256
      %42 = vsyncadd [#allocation7], %s41
      %s43 = sshll.u32 [#allocation8], 4
      %s44 = int_to_ptr.vmem [resolvable:$true] %s43
      %49 = dma.hbm_to_vmem [thread:$0]  %s2, 256, %s44, [#allocation7], 128, 128, 8
    $region13: #{lru_forward.1} parent=1 // pred_fallthru
      _
    // Predicated region
    $region14: #{lru_forward.1} parent=1 // pred_check
      _
    $region15: #{lru_forward.1} parent=1 // pred_check_branch
      %51 = sbr.rel (0) target = $region17
    $region16: #{lru_forward.1} parent=1 // pred_region
      %s53 = ssub.s32 64, 64
      %54 = vsyncadd [#allocation10], %s53
      %s56 = sshll.u32 [#allocation9], 4
      %s57 = int_to_ptr.vmem [resolvable:$true] %s56
      %59 = dma.hbm_to_vmem [thread:$0]  %s3, 64, %s57, [#allocation10]
    $region17: #{lru_forward.1} parent=1 // pred_fallthru
      _
    // Predicated region
    $region18: #{lru_forward.1} parent=1 // pred_check
      _
    $region19: #{lru_forward.1} parent=1 // pred_check_branch
      %61 = sbr.rel (0) target = $region21
    $region20: #{lru_forward.1} parent=1 // pred_region
      %s63 = ssub.s32 1024, 1024
      %64 = vsyncadd [#allocation10], %s63
      %s65 = sshll.u32 [#allocation11], 4
      %s66 = int_to_ptr.vmem [resolvable:$true] %s65
      %71 = dma.hbm_to_vmem [thread:$0]  %s4, 1024, %s66, [#allocation10], 128, 128, 8
    $region21: #{lru_forward.1} parent=1 // pred_fallthru
      _
    // Predicated region
    $region22: #{lru_forward.1} parent=1 // pred_check
      _
    $region23: #{lru_forward.1} parent=1 // pred_check_branch
      %73 = sbr.rel (0) target = $region25
    $region24: #{lru_forward.1} parent=1 // pred_region
      %s75 = ssub.s32 64, 64
      %76 = vsyncadd [#allocation13], %s75
      %s78 = sshll.u32 [#allocation12], 4
      %s79 = int_to_ptr.vmem [resolvable:$true] %s78
      %81 = dma.hbm_to_vmem [thread:$0]  %s5, 64, %s79, [#allocation13]
    $region25: #{lru_forward.1} parent=1 // pred_fallthru
      _
    // Predicated region
    $region26: #{lru_forward.1} parent=1 // pred_check
      _
    $region27: #{lru_forward.1} parent=1 // pred_check_branch
      %83 = sbr.rel (0) target = $region29
    $region28: #{lru_forward.1} parent=1 // pred_region
      %84 = dma.done [#allocation4], 3072
    $region29: #{lru_forward.1} parent=1 // pred_fallthru
      _
    // Predicated region
    $region30: #{lru_forward.1} parent=1 // pred_check
      _
    $region31: #{lru_forward.1} parent=1 // pred_check_branch
      %86 = sbr.rel (0) target = $region33
    $region32: #{lru_forward.1} parent=1 // pred_region
      %87 = dma.done [#allocation7], 128
    $region33: #{lru_forward.1} parent=1 // pred_fallthru
      _
    // Predicated region
    $region34: #{lru_forward.1} parent=1 // pred_check
      _
    $region35: #{lru_forward.1} parent=1 // pred_check_branch
      %89 = sbr.rel (0) target = $region37
    $region36: #{lru_forward.1} parent=1 // pred_region
      %90 = dma.done [#allocation7], 256
    $region37: #{lru_forward.1} parent=1 // pred_fallthru
      _
    // Predicated region
    $region38: #{lru_forward.1} parent=1 // pred_check
      _
    $region39: #{lru_forward.1} parent=1 // pred_check_branch
      %92 = sbr.rel (0) target = $region41
    $region40: #{lru_forward.1} parent=1 // pred_region
      %93 = dma.done [#allocation10], 64
    $region41: #{lru_forward.1} parent=1 // pred_fallthru
      _
    // Predicated region
    $region42: #{lru_forward.1} parent=1 // pred_check
      _
    $region43: #{lru_forward.1} parent=1 // pred_check_branch
      %95 = sbr.rel (0) target = $region45
    $region44: #{lru_forward.1} parent=1 // pred_region
      %96 = dma.done [#allocation10], 1024
    $region45: #{lru_forward.1} parent=1 // pred_fallthru
      _
    // Predicated region
    $region46: #{lru_forward.1} parent=1 // pred_check
      _
    $region47: #{lru_forward.1} parent=1 // pred_check_branch
      %98 = sbr.rel (0) target = $region49
    $region48: #{lru_forward.1} parent=1 // pred_region
      %99 = dma.done [#allocation13], 64
    $region49: #{lru_forward.1} parent=1 // pred_fallthru
      _
    %v100 = vld [vmem:[#allocation3] sm:$0xff]
    %v101 = vld [vmem:[#allocation3 + $0x8] sm:$0xff]
    %v102 = vld [vmem:[#allocation3 + $0x10] sm:$0xff]
    %v103 = vld [vmem:[#allocation3 + $0x18] sm:$0xff]
    %v104 = vld [vmem:[#allocation3 + $0x20] sm:$0xff]
    %v105 = vld [vmem:[#allocation3 + $0x28] sm:$0xff]
    %v106 = vld [vmem:[#allocation3 + $0x30] sm:$0xff]
    %v107 = vld [vmem:[#allocation3 + $0x38] sm:$0xff]
    %v108 = vld [vmem:[#allocation3 + $0x40] sm:$0xff]
    %v109 = vld [vmem:[#allocation3 + $0x48] sm:$0xff]
    %v110 = vld [vmem:[#allocation3 + $0x50] sm:$0xff]
    %v111 = vld [vmem:[#allocation3 + $0x58] sm:$0xff]
    %v112 = vld [vmem:[#allocation3 + $0x60] sm:$0xff]
    %v113 = vld [vmem:[#allocation3 + $0x68] sm:$0xff]
    %v114 = vld [vmem:[#allocation3 + $0x70] sm:$0xff]
    %v115 = vld [vmem:[#allocation3 + $0x78] sm:$0xff]
    %v116 = vld [vmem:[#allocation3 + $0x80] sm:$0xff]
    %v117 = vld [vmem:[#allocation3 + $0x88] sm:$0xff]
    %v118 = vld [vmem:[#allocation3 + $0x90] sm:$0xff]
    %v119 = vld [vmem:[#allocation3 + $0x98] sm:$0xff]
    %v120 = vld [vmem:[#allocation3 + $0xa0] sm:$0xff]
    %v121 = vld [vmem:[#allocation3 + $0xa8] sm:$0xff]
    %v122 = vld [vmem:[#allocation3 + $0xb0] sm:$0xff]
    %v123 = vld [vmem:[#allocation3 + $0xb8] sm:$0xff]
    %p124 = scmp.eq.s32.totalorder 0, 0
    // Predicated region
    $region50: #{lru_forward.1} parent=1 // pred_check
      %p125 = pneg %p124
    $region51: #{lru_forward.1} parent=1 // pred_check_branch
      %127 = sbr.rel (%p125) target = $region53
    $region52: #{lru_forward.1} parent=1 // pred_region
      %v128 = vld [vmem:[#allocation6] sm:$0xff]
      %vm129 = vcmask 523264
      %130 = vst.msk [vmem:[#allocation2] sm:$0xff] %vm129, %v128
    $region53: #{lru_forward.1} parent=1 // pred_fallthru
      _
    %v131 = vld [vmem:[#allocation8] sm:$0x1]
    %v132 = vld [vmem:[#allocation8 + $0x1] sm:$0x1]
    %v133 = vld [vmem:[#allocation9] sm:$0xf]
    %vm134 = vcmask 31744
    %v136 = vsel %vm134, %v100, 0
    %v139 = vsel %vm134, %v101, 0
    %v142 = vsel %vm134, %v102, 0
    %v145 = vsel %vm134, %v103, 0
    %v148 = vsel %vm134, %v104, 0
    %v151 = vsel %vm134, %v105, 0
    %v154 = vsel %vm134, %v106, 0
    %v157 = vsel %vm134, %v107, 0
    %v160 = vsel %vm134, %v108, 0
    %v163 = vsel %vm134, %v109, 0
    %v166 = vsel %vm134, %v110, 0
    %v169 = vsel %vm134, %v111, 0
    %v172 = vsel %vm134, %v112, 0
    %v175 = vsel %vm134, %v113, 0
    %v178 = vsel %vm134, %v114, 0
    %v181 = vsel %vm134, %v115, 0
    %v184 = vsel %vm134, %v116, 0
    %v187 = vsel %vm134, %v117, 0
    %v190 = vsel %vm134, %v118, 0
    %v193 = vsel %vm134, %v119, 0
    %v196 = vsel %vm134, %v120, 0
    %v199 = vsel %vm134, %v121, 0
    %v202 = vsel %vm134, %v122, 0
    %v205 = vsel %vm134, %v123, 0
    %vm207 = vcmask 1043456
    %v209 = vsel %vm207, %v133, 0
    %211 = vmatprep.subr.mxu0 0.0
    %212 = vmatpush1.msra.mxu0 %v209
    %213 = vmatprep.subr.mxu0 0.0
    %214 = vmatpush1.msra.mxu0 0.0
    %215 = vmatprep.subr.mxu0 0.0
    %216 = vmatpush1.msra.mxu0 0.0
    %217 = vmatprep.subr.mxu0 0.0
    %218 = vmatpush1.msra.mxu0 0.0
    %219 = vmatprep.subr.mxu0 0.0
    %220 = vmatpush1.msra.mxu0 0.0
    %221 = vmatprep.subr.mxu0 0.0
    %222 = vmatpush1.msra.mxu0 0.0
    %223 = vmatprep.subr.mxu0 0.0
    %224 = vmatpush1.msra.mxu0 0.0
    %225 = vmatprep.subr.mxu0 0.0
    %226 = vmatpush1.msra.mxu0 0.0
    %227 = vmatprep.subr.mxu0 0.0
    %228 = vmatpush1.msra.mxu0 0.0
    %229 = vmatprep.subr.mxu0 0.0
    %230 = vmatpush1.msra.mxu0 0.0
    %231 = vmatprep.subr.mxu0 0.0
    %232 = vmatpush1.msra.mxu0 0.0
    %233 = vmatprep.subr.mxu0 0.0
    %234 = vmatpush1.msra.mxu0 0.0
    %235 = vmatprep.subr.mxu0 0.0
    %236 = vmatpush1.msra.mxu0 0.0
    %237 = vmatprep.subr.mxu0 0.0
    %238 = vmatpush1.msra.mxu0 0.0
    %239 = vmatprep.subr.mxu0 0.0
    %240 = vmatpush1.msra.mxu0 0.0
    %241 = vmatprep.subr.mxu0 0.0
    %242 = vmatpush1.msra.mxu0 0.0
    %243 = vmatprep.subr.mxu0 0.0
    %244 = vmatpush1.msra.mxu0 0.0
    %245 = vmatprep.subr.mxu0 0.0
    %246 = vmatpush1.msra.mxu0 0.0
    %247 = vmatprep.subr.mxu0 0.0
    %248 = vmatpush1.msra.mxu0 0.0
    %249 = vmatprep.subr.mxu0 0.0
    %250 = vmatpush1.msra.mxu0 0.0
    %251 = vmatprep.subr.mxu0 0.0
    %252 = vmatpush1.msra.mxu0 0.0
    %253 = vmatprep.subr.mxu0 0.0
    %254 = vmatpush1.msra.mxu0 0.0
    %255 = vmatprep.subr.mxu0 0.0
    %256 = vmatpush1.msra.mxu0 0.0
    %257 = vmatprep.subr.mxu0 0.0
    %258 = vmatpush1.msra.mxu0 0.0
    %259 = vmatprep.subr.mxu0 0.0
    %260 = vmatpush1.msra.mxu0 0.0
    %261 = vmatprep.subr.mxu0 0.0
    %262 = vmatpush1.msra.mxu0 0.0
    %263 = vmatprep.subr.mxu0 0.0
    %264 = vmatpush1.msra.mxu0 0.0
    %265 = vmatprep.subr.mxu0 0.0
    %266 = vmatpush1.msra.mxu0 0.0
    %267 = vmatprep.subr.mxu0 0.0
    %268 = vmatpush1.msra.mxu0 0.0
    %269 = vmatprep.subr.mxu0 0.0
    %270 = vmatpush1.msra.mxu0 0.0
    %271 = vmatprep.subr.mxu0 0.0
    %272 = vmatpush1.msra.mxu0 0.0
    %273 = vmatprep.subr.mxu0 0.0
    %274 = vmatpush1.msra.mxu0 0.0
    %275 = vmatprep.mubr.f32.mxu0 0.0
    %276 = vmatmul.mubr.f32.gmra.mrb[0].mxu0 %v136
    %v277 = vpop.f32.mrb[0].mxu0
    %v278 = vadd.f32 0.0, %v277
    %v279 = vpop.f32.mrb[0].mxu0
    %280 = vmatprep.mubr.f32.mxu0 0.0
    %281 = vmatmul.mubr.f32.gmra.mrb[0].mxu0 %v139
    %v282 = vpop.f32.mrb[0].mxu0
    %v283 = vadd.f32 0.0, %v282
    %v284 = vpop.f32.mrb[0].mxu0
    %285 = vmatprep.mubr.f32.mxu0 0.0
    %286 = vmatmul.mubr.f32.gmra.mrb[0].mxu0 %v142
    %v287 = vpop.f32.mrb[0].mxu0
    %v288 = vadd.f32 0.0, %v287
    %v289 = vpop.f32.mrb[0].mxu0
    %290 = vmatprep.mubr.f32.mxu0 0.0
    %291 = vmatmul.mubr.f32.gmra.mrb[0].mxu0 %v145
    %v292 = vpop.f32.mrb[0].mxu0
    %v293 = vadd.f32 0.0, %v292
    %v294 = vpop.f32.mrb[0].mxu0
    %295 = vmatprep.mubr.f32.mxu0 0.0
    %296 = vmatmul.mubr.f32.gmra.mrb[0].mxu0 %v148
    %v297 = vpop.f32.mrb[0].mxu0
    %v298 = vadd.f32 0.0, %v297
    %v299 = vpop.f32.mrb[0].mxu0
    %300 = vmatprep.mubr.f32.mxu0 0.0
    %301 = vmatmul.mubr.f32.gmra.mrb[0].mxu0 %v151
    %v302 = vpop.f32.mrb[0].mxu0
    %v303 = vadd.f32 0.0, %v302
    %v304 = vpop.f32.mrb[0].mxu0
    %305 = vmatprep.mubr.f32.mxu0 0.0
    %306 = vmatmul.mubr.f32.gmra.mrb[0].mxu0 %v154
    %v307 = vpop.f32.mrb[0].mxu0
    %v308 = vadd.f32 0.0, %v307
    %v309 = vpop.f32.mrb[0].mxu0
    %310 = vmatprep.mubr.f32.mxu0 0.0
    %311 = vmatmul.mubr.f32.gmra.mrb[0].mxu0 %v157
    %v312 = vpop.f32.mrb[0].mxu0
    %v313 = vadd.f32 0.0, %v312
    %v314 = vpop.f32.mrb[0].mxu0
    %315 = vmatprep.mubr.f32.mxu0 0.0
    %316 = vmatmul.mubr.f32.gmra.mrb[0].mxu0 %v160
    %v317 = vpop.f32.mrb[0].mxu0
    %v318 = vadd.f32 0.0, %v317
    %v319 = vpop.f32.mrb[0].mxu0
    %320 = vmatprep.mubr.f32.mxu0 0.0
    %321 = vmatmul.mubr.f32.gmra.mrb[0].mxu0 %v163
    %v322 = vpop.f32.mrb[0].mxu0
    %v323 = vadd.f32 0.0, %v322
    %v324 = vpop.f32.mrb[0].mxu0
    %325 = vmatprep.mubr.f32.mxu0 0.0
    %326 = vmatmul.mubr.f32.gmra.mrb[0].mxu0 %v166
    %v327 = vpop.f32.mrb[0].mxu0
    %v328 = vadd.f32 0.0, %v327
    %v329 = vpop.f32.mrb[0].mxu0
    %330 = vmatprep.mubr.f32.mxu0 0.0
    %331 = vmatmul.mubr.f32.gmra.mrb[0].mxu0 %v169
    %v332 = vpop.f32.mrb[0].mxu0
    %v333 = vadd.f32 0.0, %v332
    %v334 = vpop.f32.mrb[0].mxu0
    %335 = vmatprep.mubr.f32.mxu0 0.0
    %336 = vmatmul.mubr.f32.gmra.mrb[0].mxu0 %v172
    %v337 = vpop.f32.mrb[0].mxu0
    %v338 = vadd.f32 0.0, %v337
    %v339 = vpop.f32.mrb[0].mxu0
    %340 = vmatprep.mubr.f32.mxu0 0.0
    %341 = vmatmul.mubr.f32.gmra.mrb[0].mxu0 %v175
    %v342 = vpop.f32.mrb[0].mxu0
    %v343 = vadd.f32 0.0, %v342
    %v344 = vpop.f32.mrb[0].mxu0
    %345 = vmatprep.mubr.f32.mxu0 0.0
    %346 = vmatmul.mubr.f32.gmra.mrb[0].mxu0 %v178
    %v347 = vpop.f32.mrb[0].mxu0
    %v348 = vadd.f32 0.0, %v347
    %v349 = vpop.f32.mrb[0].mxu0
    %350 = vmatprep.mubr.f32.mxu0 0.0
    %351 = vmatmul.mubr.f32.gmra.mrb[0].mxu0 %v181
    %v352 = vpop.f32.mrb[0].mxu0
    %v353 = vadd.f32 0.0, %v352
    %v354 = vpop.f32.mrb[0].mxu0
    %355 = vmatprep.mubr.f32.mxu0 0.0
    %356 = vmatmul.mubr.f32.gmra.mrb[0].mxu0 %v184
    %v357 = vpop.f32.mrb[0].mxu0
    %v358 = vadd.f32 0.0, %v357
    %v359 = vpop.f32.mrb[0].mxu0
    %360 = vmatprep.mubr.f32.mxu0 0.0
    %361 = vmatmul.mubr.f32.gmra.mrb[0].mxu0 %v187
    %v362 = vpop.f32.mrb[0].mxu0
    %v363 = vadd.f32 0.0, %v362
    %v364 = vpop.f32.mrb[0].mxu0
    %365 = vmatprep.mubr.f32.mxu0 0.0
    %366 = vmatmul.mubr.f32.gmra.mrb[0].mxu0 %v190
    %v367 = vpop.f32.mrb[0].mxu0
    %v368 = vadd.f32 0.0, %v367
    %v369 = vpop.f32.mrb[0].mxu0
    %370 = vmatprep.mubr.f32.mxu0 0.0
    %371 = vmatmul.mubr.f32.gmra.mrb[0].mxu0 %v193
    %v372 = vpop.f32.mrb[0].mxu0
    %v373 = vadd.f32 0.0, %v372
    %v374 = vpop.f32.mrb[0].mxu0
    %375 = vmatprep.mubr.f32.mxu0 0.0
    %376 = vmatmul.mubr.f32.gmra.mrb[0].mxu0 %v196
    %v377 = vpop.f32.mrb[0].mxu0
    %v378 = vadd.f32 0.0, %v377
    %v379 = vpop.f32.mrb[0].mxu0
    %380 = vmatprep.mubr.f32.mxu0 0.0
    %381 = vmatmul.mubr.f32.gmra.mrb[0].mxu0 %v199
    %v382 = vpop.f32.mrb[0].mxu0
    %v383 = vadd.f32 0.0, %v382
    %v384 = vpop.f32.mrb[0].mxu0
    %385 = vmatprep.mubr.f32.mxu0 0.0
    %386 = vmatmul.mubr.f32.gmra.mrb[0].mxu0 %v202
    %v387 = vpop.f32.mrb[0].mxu0
    %v388 = vadd.f32 0.0, %v387
    %v389 = vpop.f32.mrb[0].mxu0
    %390 = vmatprep.mubr.f32.mxu0 0.0
    %391 = vmatmul.mubr.f32.gmra.mrb[0].mxu0 %v205
    %v392 = vpop.f32.mrb[0].mxu0
    %v393 = vadd.f32 0.0, %v392
    %v394 = vpop.f32.mrb[0].mxu0
    %395 = vdwg.mxu0
    %v396 = vld [vmem:[#allocation2] sm:$0xff]
    %v397 = vlaneseq
    %v398 = vshrl.u32 %v397, 7
    %v399 = vsub.s32 0, %v398
    %v400 = vrot.slane %v131, %v399
    %v401 = vmul.f32 %v396, %v400
    %v402 = vadd.f32 %v278, %v401
    %404 = vrot.lane.b32.xlu0 %v396, 96
    %v405 = vpop.permute.xlu0 %404
    %407 = vrot.lane.b32.xlu0 %v396, 32
    %v408 = vpop.permute.xlu0 %407
    %vm410 = vcmask 261120
    %v411 = vsel %vm410, %v405, %v408
    %v412 = vlaneseq
    %v413 = vshrl.u32 %v412, 7
    %v414 = vsub.s32 0, %v413
    %v415 = vrot.slane %v132, %v414
    %v416 = vmul.f32 %v411, %v415
    %v417 = vadd.f32 %v402, %v416
    %v418 = vld [vmem:[#allocation8 + $0x2] sm:$0x1]
    %v419 = vld [vmem:[#allocation8 + $0x3] sm:$0x1]
    %v420 = vlaneseq
    %v421 = vshrl.u32 %v420, 7
    %v422 = vsub.s32 0, %v421
    %v423 = vrot.slane %v418, %v422
    %v424 = vmul.f32 %v423, 0.0
    %v425 = vmul.f32 %v417, %v423
    %v426 = vmul.f32 %v283, %v423
    %v427 = vmul.f32 %v288, %v423
    %v428 = vmul.f32 %v293, %v423
    %v429 = vmul.f32 %v298, %v423
    %v430 = vmul.f32 %v303, %v423
    %v431 = vmul.f32 %v308, %v423
    %v432 = vmul.f32 %v313, %v423
    %v433 = vmul.f32 %v318, %v423
    %v434 = vmul.f32 %v323, %v423
    %v435 = vmul.f32 %v328, %v423
    %v436 = vmul.f32 %v333, %v423
    %v437 = vmul.f32 %v338, %v423
    %v438 = vmul.f32 %v343, %v423
    %v439 = vmul.f32 %v348, %v423
    %v440 = vmul.f32 %v353, %v423
    %v441 = vmul.f32 %v358, %v423
    %v442 = vmul.f32 %v363, %v423
    %v443 = vmul.f32 %v368, %v423
    %v444 = vmul.f32 %v373, %v423
    %v445 = vmul.f32 %v378, %v423
    %v446 = vmul.f32 %v383, %v423
    %v447 = vmul.f32 %v388, %v423
    %v448 = vadd.f32 %v417, %v424
    %v449 = vadd.f32 %v283, %v425
    %v450 = vadd.f32 %v288, %v426
    %v451 = vadd.f32 %v293, %v427
    %v452 = vadd.f32 %v298, %v428
    %v453 = vadd.f32 %v303, %v429
    %v454 = vadd.f32 %v308, %v430
    %v455 = vadd.f32 %v313, %v431
    %v456 = vadd.f32 %v318, %v432
    %v457 = vadd.f32 %v323, %v433
    %v458 = vadd.f32 %v328, %v434
    %v459 = vadd.f32 %v333, %v435
    %v460 = vadd.f32 %v338, %v436
    %v461 = vadd.f32 %v343, %v437
    %v462 = vadd.f32 %v348, %v438
    %v463 = vadd.f32 %v353, %v439
    %v464 = vadd.f32 %v358, %v440
    %v465 = vadd.f32 %v363, %v441
    %v466 = vadd.f32 %v368, %v442
    %v467 = vadd.f32 %v373, %v443
    %v468 = vadd.f32 %v378, %v444
    %v469 = vadd.f32 %v383, %v445
    %v470 = vadd.f32 %v388, %v446
    %v471 = vadd.f32 %v393, %v447
    %496 = vrot.lane.b32.xlu0 0.0, 96
    %v497 = vpop.permute.xlu0 %496
    %498 = vrot.lane.b32.xlu0 %v417, 96
    %v499 = vpop.permute.xlu0 %498
    %500 = vrot.lane.b32.xlu0 %v283, 96
    %v501 = vpop.permute.xlu0 %500
    %502 = vrot.lane.b32.xlu0 %v288, 96
    %v503 = vpop.permute.xlu0 %502
    %504 = vrot.lane.b32.xlu0 %v293, 96
    %v505 = vpop.permute.xlu0 %504
    %506 = vrot.lane.b32.xlu0 %v298, 96
    %v507 = vpop.permute.xlu0 %506
    %508 = vrot.lane.b32.xlu0 %v303, 96
    %v509 = vpop.permute.xlu0 %508
    %510 = vrot.lane.b32.xlu0 %v308, 96
    %v511 = vpop.permute.xlu0 %510
    %512 = vrot.lane.b32.xlu0 %v313, 96
    %v513 = vpop.permute.xlu0 %512
    %514 = vrot.lane.b32.xlu0 %v318, 96
    %v515 = vpop.permute.xlu0 %514
    %516 = vrot.lane.b32.xlu0 %v323, 96
    %v517 = vpop.permute.xlu0 %516
    %518 = vrot.lane.b32.xlu0 %v328, 96
    %v519 = vpop.permute.xlu0 %518
    %520 = vrot.lane.b32.xlu0 %v333, 96
    %v521 = vpop.permute.xlu0 %520
    %522 = vrot.lane.b32.xlu0 %v338, 96
    %v523 = vpop.permute.xlu0 %522
    %524 = vrot.lane.b32.xlu0 %v343, 96
    %v525 = vpop.permute.xlu0 %524
    %526 = vrot.lane.b32.xlu0 %v348, 96
    %v527 = vpop.permute.xlu0 %526
    %528 = vrot.lane.b32.xlu0 %v353, 96
    %v529 = vpop.permute.xlu0 %528
    %530 = vrot.lane.b32.xlu0 %v358, 96
    %v531 = vpop.permute.xlu0 %530
    %532 = vrot.lane.b32.xlu0 %v363, 96
    %v533 = vpop.permute.xlu0 %532
    %534 = vrot.lane.b32.xlu0 %v368, 96
    %v535 = vpop.permute.xlu0 %534
    %536 = vrot.lane.b32.xlu0 %v373, 96
    %v537 = vpop.permute.xlu0 %536
    %538 = vrot.lane.b32.xlu0 %v378, 96
    %v539 = vpop.permute.xlu0 %538
    %540 = vrot.lane.b32.xlu0 %v383, 96
    %v541 = vpop.permute.xlu0 %540
    %542 = vrot.lane.b32.xlu0 %v388, 96
    %v543 = vpop.permute.xlu0 %542
    %568 = vrot.lane.b32.xlu0 0.0, 32
    %v569 = vpop.permute.xlu0 %568
    %570 = vrot.lane.b32.xlu0 %v417, 32
    %v571 = vpop.permute.xlu0 %570
    %572 = vrot.lane.b32.xlu0 %v283, 32
    %v573 = vpop.permute.xlu0 %572
    %574 = vrot.lane.b32.xlu0 %v288, 32
    %v575 = vpop.permute.xlu0 %574
    %576 = vrot.lane.b32.xlu0 %v293, 32
    %v577 = vpop.permute.xlu0 %576
    %578 = vrot.lane.b32.xlu0 %v298, 32
    %v579 = vpop.permute.xlu0 %578
    %580 = vrot.lane.b32.xlu0 %v303, 32
    %v581 = vpop.permute.xlu0 %580
    %582 = vrot.lane.b32.xlu0 %v308, 32
    %v583 = vpop.permute.xlu0 %582
    %584 = vrot.lane.b32.xlu0 %v313, 32
    %v585 = vpop.permute.xlu0 %584
    %586 = vrot.lane.b32.xlu0 %v318, 32
    %v587 = vpop.permute.xlu0 %586
    %588 = vrot.lane.b32.xlu0 %v323, 32
    %v589 = vpop.permute.xlu0 %588
    %590 = vrot.lane.b32.xlu0 %v328, 32
    %v591 = vpop.permute.xlu0 %590
    %592 = vrot.lane.b32.xlu0 %v333, 32
    %v593 = vpop.permute.xlu0 %592
    %594 = vrot.lane.b32.xlu0 %v338, 32
    %v595 = vpop.permute.xlu0 %594
    %596 = vrot.lane.b32.xlu0 %v343, 32
    %v597 = vpop.permute.xlu0 %596
    %598 = vrot.lane.b32.xlu0 %v348, 32
    %v599 = vpop.permute.xlu0 %598
    %600 = vrot.lane.b32.xlu0 %v353, 32
    %v601 = vpop.permute.xlu0 %600
    %602 = vrot.lane.b32.xlu0 %v358, 32
    %v603 = vpop.permute.xlu0 %602
    %604 = vrot.lane.b32.xlu0 %v363, 32
    %v605 = vpop.permute.xlu0 %604
    %606 = vrot.lane.b32.xlu0 %v368, 32
    %v607 = vpop.permute.xlu0 %606
    %608 = vrot.lane.b32.xlu0 %v373, 32
    %v609 = vpop.permute.xlu0 %608
    %610 = vrot.lane.b32.xlu0 %v378, 32
    %v611 = vpop.permute.xlu0 %610
    %612 = vrot.lane.b32.xlu0 %v383, 32
    %v613 = vpop.permute.xlu0 %612
    %614 = vrot.lane.b32.xlu0 %v388, 32
    %v615 = vpop.permute.xlu0 %614
    %v640 = vsel %vm410, %v497, %v569
    %v641 = vsel %vm410, %v499, %v571
    %v642 = vsel %vm410, %v501, %v573
    %v643 = vsel %vm410, %v503, %v575
    %v644 = vsel %vm410, %v505, %v577
    %v645 = vsel %vm410, %v507, %v579
    %v646 = vsel %vm410, %v509, %v581
    %v647 = vsel %vm410, %v511, %v583
    %v648 = vsel %vm410, %v513, %v585
    %v649 = vsel %vm410, %v515, %v587
    %v650 = vsel %vm410, %v517, %v589
    %v651 = vsel %vm410, %v519, %v591
    %v652 = vsel %vm410, %v521, %v593
    %v653 = vsel %vm410, %v523, %v595
    %v654 = vsel %vm410, %v525, %v597
    %v655 = vsel %vm410, %v527, %v599
    %v656 = vsel %vm410, %v529, %v601
    %v657 = vsel %vm410, %v531, %v603
    %v658 = vsel %vm410, %v533, %v605
    %v659 = vsel %vm410, %v535, %v607
    %v660 = vsel %vm410, %v537, %v609
    %v661 = vsel %vm410, %v539, %v611
    %v662 = vsel %vm410, %v541, %v613
    %v663 = vsel %vm410, %v543, %v615
    %v664 = vlaneseq
    %v665 = vshrl.u32 %v664, 7
    %v666 = vsub.s32 0, %v665
    %v667 = vrot.slane %v419, %v666
    %v668 = vmul.f32 %v640, %v667
    %v669 = vmul.f32 %v641, %v667
    %v670 = vmul.f32 %v642, %v667
    %v671 = vmul.f32 %v643, %v667
    %v672 = vmul.f32 %v644, %v667
    %v673 = vmul.f32 %v645, %v667
    %v674 = vmul.f32 %v646, %v667
    %v675 = vmul.f32 %v647, %v667
    %v676 = vmul.f32 %v648, %v667
    %v677 = vmul.f32 %v649, %v667
    %v678 = vmul.f32 %v650, %v667
    %v679 = vmul.f32 %v651, %v667
    %v680 = vmul.f32 %v652, %v667
    %v681 = vmul.f32 %v653, %v667
    %v682 = vmul.f32 %v654, %v667
    %v683 = vmul.f32 %v655, %v667
    %v684 = vmul.f32 %v656, %v667
    %v685 = vmul.f32 %v657, %v667
    %v686 = vmul.f32 %v658, %v667
    %v687 = vmul.f32 %v659, %v667
    %v688 = vmul.f32 %v660, %v667
    %v689 = vmul.f32 %v661, %v667
    %v690 = vmul.f32 %v662, %v667
    %v691 = vmul.f32 %v663, %v667
    %v692 = vadd.f32 %v448, %v668
    %v693 = vadd.f32 %v449, %v669
    %v694 = vadd.f32 %v450, %v670
    %v695 = vadd.f32 %v451, %v671
    %v696 = vadd.f32 %v452, %v672
    %v697 = vadd.f32 %v453, %v673
    %v698 = vadd.f32 %v454, %v674
    %v699 = vadd.f32 %v455, %v675
    %v700 = vadd.f32 %v456, %v676
    %v701 = vadd.f32 %v457, %v677
    %v702 = vadd.f32 %v458, %v678
    %v703 = vadd.f32 %v459, %v679
    %v704 = vadd.f32 %v460, %v680
    %v705 = vadd.f32 %v461, %v681
    %v706 = vadd.f32 %v462, %v682
    %v707 = vadd.f32 %v463, %v683
    %v708 = vadd.f32 %v464, %v684
    %v709 = vadd.f32 %v465, %v685
    %v710 = vadd.f32 %v466, %v686
    %v711 = vadd.f32 %v467, %v687
    %v712 = vadd.f32 %v468, %v688
    %v713 = vadd.f32 %v469, %v689
    %v714 = vadd.f32 %v470, %v690
    %v715 = vadd.f32 %v471, %v691
    %v716 = vld [vmem:[#allocation8 + $0x4] sm:$0x1]
    %v717 = vld [vmem:[#allocation8 + $0x5] sm:$0x1]
    %v718 = vlaneseq
    %v719 = vshrl.u32 %v718, 7
    %v720 = vsub.s32 0, %v719
    %v721 = vrot.slane %v716, %v720
    %v722 = vmul.f32 %v721, 0.0
    %v723 = vmul.f32 %v692, %v721
    %v724 = vmul.f32 %v693, %v721
    %v725 = vmul.f32 %v694, %v721
    %v726 = vmul.f32 %v695, %v721
    %v727 = vmul.f32 %v696, %v721
    %v728 = vmul.f32 %v697, %v721
    %v729 = vmul.f32 %v698, %v721
    %v730 = vmul.f32 %v699, %v721
    %v731 = vmul.f32 %v700, %v721
    %v732 = vmul.f32 %v701, %v721
    %v733 = vmul.f32 %v702, %v721
    %v734 = vmul.f32 %v703, %v721
    %v735 = vmul.f32 %v704, %v721
    %v736 = vmul.f32 %v705, %v721
    %v737 = vmul.f32 %v706, %v721
    %v738 = vmul.f32 %v707, %v721
    %v739 = vmul.f32 %v708, %v721
    %v740 = vmul.f32 %v709, %v721
    %v741 = vmul.f32 %v710, %v721
    %v742 = vmul.f32 %v711, %v721
    %v743 = vmul.f32 %v712, %v721
    %v744 = vmul.f32 %v713, %v721
    %v745 = vadd.f32 %v692, %v722
    %v746 = vadd.f32 %v693, %v722
    %v747 = vadd.f32 %v694, %v723
    %v748 = vadd.f32 %v695, %v724
    %v749 = vadd.f32 %v696, %v725
    %v750 = vadd.f32 %v697, %v726
    %v751 = vadd.f32 %v698, %v727
    %v752 = vadd.f32 %v699, %v728
    %v753 = vadd.f32 %v700, %v729
    %v754 = vadd.f32 %v701, %v730
    %v755 = vadd.f32 %v702, %v731
    %v756 = vadd.f32 %v703, %v732
    %v757 = vadd.f32 %v704, %v733
    %v758 = vadd.f32 %v705, %v734
    %v759 = vadd.f32 %v706, %v735
    %v760 = vadd.f32 %v707, %v736
    %v761 = vadd.f32 %v708, %v737
    %v762 = vadd.f32 %v709, %v738
    %v763 = vadd.f32 %v710, %v739
    %v764 = vadd.f32 %v711, %v740
    %v765 = vadd.f32 %v712, %v741
    %v766 = vadd.f32 %v713, %v742
    %v767 = vadd.f32 %v714, %v743
    %v768 = vadd.f32 %v715, %v744
    %791 = vrot.lane.b32.xlu0 %v692, 96
    %v792 = vpop.permute.xlu0 %791
    %793 = vrot.lane.b32.xlu0 %v693, 96
    %v794 = vpop.permute.xlu0 %793
    %795 = vrot.lane.b32.xlu0 %v694, 96
    %v796 = vpop.permute.xlu0 %795
    %797 = vrot.lane.b32.xlu0 %v695, 96
    %v798 = vpop.permute.xlu0 %797
    %799 = vrot.lane.b32.xlu0 %v696, 96
    %v800 = vpop.permute.xlu0 %799
    %801 = vrot.lane.b32.xlu0 %v697, 96
    %v802 = vpop.permute.xlu0 %801
    %803 = vrot.lane.b32.xlu0 %v698, 96
    %v804 = vpop.permute.xlu0 %803
    %805 = vrot.lane.b32.xlu0 %v699, 96
    %v806 = vpop.permute.xlu0 %805
    %807 = vrot.lane.b32.xlu0 %v700, 96
    %v808 = vpop.permute.xlu0 %807
    %809 = vrot.lane.b32.xlu0 %v701, 96
    %v810 = vpop.permute.xlu0 %809
    %811 = vrot.lane.b32.xlu0 %v702, 96
    %v812 = vpop.permute.xlu0 %811
    %813 = vrot.lane.b32.xlu0 %v703, 96
    %v814 = vpop.permute.xlu0 %813
    %815 = vrot.lane.b32.xlu0 %v704, 96
    %v816 = vpop.permute.xlu0 %815
    %817 = vrot.lane.b32.xlu0 %v705, 96
    %v818 = vpop.permute.xlu0 %817
    %819 = vrot.lane.b32.xlu0 %v706, 96
    %v820 = vpop.permute.xlu0 %819
    %821 = vrot.lane.b32.xlu0 %v707, 96
    %v822 = vpop.permute.xlu0 %821
    %823 = vrot.lane.b32.xlu0 %v708, 96
    %v824 = vpop.permute.xlu0 %823
    %825 = vrot.lane.b32.xlu0 %v709, 96
    %v826 = vpop.permute.xlu0 %825
    %827 = vrot.lane.b32.xlu0 %v710, 96
    %v828 = vpop.permute.xlu0 %827
    %829 = vrot.lane.b32.xlu0 %v711, 96
    %v830 = vpop.permute.xlu0 %829
    %831 = vrot.lane.b32.xlu0 %v712, 96
    %v832 = vpop.permute.xlu0 %831
    %833 = vrot.lane.b32.xlu0 %v713, 96
    %v834 = vpop.permute.xlu0 %833
    %857 = vrot.lane.b32.xlu0 %v692, 32
    %v858 = vpop.permute.xlu0 %857
    %859 = vrot.lane.b32.xlu0 %v693, 32
    %v860 = vpop.permute.xlu0 %859
    %861 = vrot.lane.b32.xlu0 %v694, 32
    %v862 = vpop.permute.xlu0 %861
    %863 = vrot.lane.b32.xlu0 %v695, 32
    %v864 = vpop.permute.xlu0 %863
    %865 = vrot.lane.b32.xlu0 %v696, 32
    %v866 = vpop.permute.xlu0 %865
    %867 = vrot.lane.b32.xlu0 %v697, 32
    %v868 = vpop.permute.xlu0 %867
    %869 = vrot.lane.b32.xlu0 %v698, 32
    %v870 = vpop.permute.xlu0 %869
    %871 = vrot.lane.b32.xlu0 %v699, 32
    %v872 = vpop.permute.xlu0 %871
    %873 = vrot.lane.b32.xlu0 %v700, 32
    %v874 = vpop.permute.xlu0 %873
    %875 = vrot.lane.b32.xlu0 %v701, 32
    %v876 = vpop.permute.xlu0 %875
    %877 = vrot.lane.b32.xlu0 %v702, 32
    %v878 = vpop.permute.xlu0 %877
    %879 = vrot.lane.b32.xlu0 %v703, 32
    %v880 = vpop.permute.xlu0 %879
    %881 = vrot.lane.b32.xlu0 %v704, 32
    %v882 = vpop.permute.xlu0 %881
    %883 = vrot.lane.b32.xlu0 %v705, 32
    %v884 = vpop.permute.xlu0 %883
    %885 = vrot.lane.b32.xlu0 %v706, 32
    %v886 = vpop.permute.xlu0 %885
    %887 = vrot.lane.b32.xlu0 %v707, 32
    %v888 = vpop.permute.xlu0 %887
    %889 = vrot.lane.b32.xlu0 %v708, 32
    %v890 = vpop.permute.xlu0 %889
    %891 = vrot.lane.b32.xlu0 %v709, 32
    %v892 = vpop.permute.xlu0 %891
    %893 = vrot.lane.b32.xlu0 %v710, 32
    %v894 = vpop.permute.xlu0 %893
    %895 = vrot.lane.b32.xlu0 %v711, 32
    %v896 = vpop.permute.xlu0 %895
    %897 = vrot.lane.b32.xlu0 %v712, 32
    %v898 = vpop.permute.xlu0 %897
    %899 = vrot.lane.b32.xlu0 %v713, 32
    %v900 = vpop.permute.xlu0 %899
    %v923 = vsel %vm410, %v792, %v858
    %v924 = vsel %vm410, %v794, %v860
    %v925 = vsel %vm410, %v796, %v862
    %v926 = vsel %vm410, %v798, %v864
    %v927 = vsel %vm410, %v800, %v866
    %v928 = vsel %vm410, %v802, %v868
    %v929 = vsel %vm410, %v804, %v870
    %v930 = vsel %vm410, %v806, %v872
    %v931 = vsel %vm410, %v808, %v874
    %v932 = vsel %vm410, %v810, %v876
    %v933 = vsel %vm410, %v812, %v878
    %v934 = vsel %vm410, %v814, %v880
    %v935 = vsel %vm410, %v816, %v882
    %v936 = vsel %vm410, %v818, %v884
    %v937 = vsel %vm410, %v820, %v886
    %v938 = vsel %vm410, %v822, %v888
    %v939 = vsel %vm410, %v824, %v890
    %v940 = vsel %vm410, %v826, %v892
    %v941 = vsel %vm410, %v828, %v894
    %v942 = vsel %vm410, %v830, %v896
    %v943 = vsel %vm410, %v832, %v898
    %v944 = vsel %vm410, %v834, %v900
    %v945 = vlaneseq
    %v946 = vshrl.u32 %v945, 7
    %v947 = vsub.s32 0, %v946
    %v948 = vrot.slane %v717, %v947
    %v949 = vmul.f32 %v640, %v948
    %v950 = vmul.f32 %v923, %v948
    %v951 = vmul.f32 %v924, %v948
    %v952 = vmul.f32 %v925, %v948
    %v953 = vmul.f32 %v926, %v948
    %v954 = vmul.f32 %v927, %v948
    %v955 = vmul.f32 %v928, %v948
    %v956 = vmul.f32 %v929, %v948
    %v957 = vmul.f32 %v930, %v948
    %v958 = vmul.f32 %v931, %v948
    %v959 = vmul.f32 %v932, %v948
    %v960 = vmul.f32 %v933, %v948
    %v961 = vmul.f32 %v934, %v948
    %v962 = vmul.f32 %v935, %v948
    %v963 = vmul.f32 %v936, %v948
    %v964 = vmul.f32 %v937, %v948
    %v965 = vmul.f32 %v938, %v948
    %v966 = vmul.f32 %v939, %v948
    %v967 = vmul.f32 %v940, %v948
    %v968 = vmul.f32 %v941, %v948
    %v969 = vmul.f32 %v942, %v948
    %v970 = vmul.f32 %v943, %v948
    %v971 = vmul.f32 %v944, %v948
    %v972 = vadd.f32 %v745, %v949
    %v973 = vadd.f32 %v746, %v949
    %v974 = vadd.f32 %v747, %v950
    %v975 = vadd.f32 %v748, %v951
    %v976 = vadd.f32 %v749, %v952
    %v977 = vadd.f32 %v750, %v953
    %v978 = vadd.f32 %v751, %v954
    %v979 = vadd.f32 %v752, %v955
    %v980 = vadd.f32 %v753, %v956
    %v981 = vadd.f32 %v754, %v957
    %v982 = vadd.f32 %v755, %v958
    %v983 = vadd.f32 %v756, %v959
    %v984 = vadd.f32 %v757, %v960
    %v985 = vadd.f32 %v758, %v961
    %v986 = vadd.f32 %v759, %v962
    %v987 = vadd.f32 %v760, %v963
    %v988 = vadd.f32 %v761, %v964
    %v989 = vadd.f32 %v762, %v965
    %v990 = vadd.f32 %v763, %v966
    %v991 = vadd.f32 %v764, %v967
    %v992 = vadd.f32 %v765, %v968
    %v993 = vadd.f32 %v766, %v969
    %v994 = vadd.f32 %v767, %v970
    %v995 = vadd.f32 %v768, %v971
    %v996 = vld [vmem:[#allocation8 + $0x6] sm:$0x1]
    %v997 = vld [vmem:[#allocation8 + $0x7] sm:$0x1]
    %v998 = vlaneseq
    %v999 = vshrl.u32 %v998, 7
    %v1000 = vsub.s32 0, %v999
    %v1001 = vrot.slane %v996, %v1000
    %v1002 = vmul.f32 %v1001, 0.0
    %v1003 = vmul.f32 %v972, %v1001
    %v1004 = vmul.f32 %v973, %v1001
    %v1005 = vmul.f32 %v974, %v1001
    %v1006 = vmul.f32 %v975, %v1001
    %v1007 = vmul.f32 %v976, %v1001
    %v1008 = vmul.f32 %v977, %v1001
    %v1009 = vmul.f32 %v978, %v1001
    %v1010 = vmul.f32 %v979, %v1001
    %v1011 = vmul.f32 %v980, %v1001
    %v1012 = vmul.f32 %v981, %v1001
    %v1013 = vmul.f32 %v982, %v1001
    %v1014 = vmul.f32 %v983, %v1001
    %v1015 = vmul.f32 %v984, %v1001
    %v1016 = vmul.f32 %v985, %v1001
    %v1017 = vmul.f32 %v986, %v1001
    %v1018 = vmul.f32 %v987, %v1001
    %v1019 = vmul.f32 %v988, %v1001
    %v1020 = vmul.f32 %v989, %v1001
    %v1021 = vmul.f32 %v990, %v1001
    %v1022 = vmul.f32 %v991, %v1001
    %v1023 = vadd.f32 %v972, %v1002
    %v1024 = vadd.f32 %v973, %v1002
    %v1025 = vadd.f32 %v974, %v1002
    %v1026 = vadd.f32 %v975, %v1002
    %v1027 = vadd.f32 %v976, %v1003
    %v1028 = vadd.f32 %v977, %v1004
    %v1029 = vadd.f32 %v978, %v1005
    %v1030 = vadd.f32 %v979, %v1006
    %v1031 = vadd.f32 %v980, %v1007
    %v1032 = vadd.f32 %v981, %v1008
    %v1033 = vadd.f32 %v982, %v1009
    %v1034 = vadd.f32 %v983, %v1010
    %v1035 = vadd.f32 %v984, %v1011
    %v1036 = vadd.f32 %v985, %v1012
    %v1037 = vadd.f32 %v986, %v1013
    %v1038 = vadd.f32 %v987, %v1014
    %v1039 = vadd.f32 %v988, %v1015
    %v1040 = vadd.f32 %v989, %v1016
    %v1041 = vadd.f32 %v990, %v1017
    %v1042 = vadd.f32 %v991, %v1018
    %v1043 = vadd.f32 %v992, %v1019
    %v1044 = vadd.f32 %v993, %v1020
    %v1045 = vadd.f32 %v994, %v1021
    %v1046 = vadd.f32 %v995, %v1022
    %1067 = vrot.lane.b32.xlu0 %v972, 96
    %v1068 = vpop.permute.xlu0 %1067
    %1069 = vrot.lane.b32.xlu0 %v973, 96
    %v1070 = vpop.permute.xlu0 %1069
    %1071 = vrot.lane.b32.xlu0 %v974, 96
    %v1072 = vpop.permute.xlu0 %1071
    %1073 = vrot.lane.b32.xlu0 %v975, 96
    %v1074 = vpop.permute.xlu0 %1073
    %1075 = vrot.lane.b32.xlu0 %v976, 96
    %v1076 = vpop.permute.xlu0 %1075
    %1077 = vrot.lane.b32.xlu0 %v977, 96
    %v1078 = vpop.permute.xlu0 %1077
    %1079 = vrot.lane.b32.xlu0 %v978, 96
    %v1080 = vpop.permute.xlu0 %1079
    %1081 = vrot.lane.b32.xlu0 %v979, 96
    %v1082 = vpop.permute.xlu0 %1081
    %1083 = vrot.lane.b32.xlu0 %v980, 96
    %v1084 = vpop.permute.xlu0 %1083
    %1085 = vrot.lane.b32.xlu0 %v981, 96
    %v1086 = vpop.permute.xlu0 %1085
    %1087 = vrot.lane.b32.xlu0 %v982, 96
    %v1088 = vpop.permute.xlu0 %1087
    %1089 = vrot.lane.b32.xlu0 %v983, 96
    %v1090 = vpop.permute.xlu0 %1089
    %1091 = vrot.lane.b32.xlu0 %v984, 96
    %v1092 = vpop.permute.xlu0 %1091
    %1093 = vrot.lane.b32.xlu0 %v985, 96
    %v1094 = vpop.permute.xlu0 %1093
    %1095 = vrot.lane.b32.xlu0 %v986, 96
    %v1096 = vpop.permute.xlu0 %1095
    %1097 = vrot.lane.b32.xlu0 %v987, 96
    %v1098 = vpop.permute.xlu0 %1097
    %1099 = vrot.lane.b32.xlu0 %v988, 96
    %v1100 = vpop.permute.xlu0 %1099
    %1101 = vrot.lane.b32.xlu0 %v989, 96
    %v1102 = vpop.permute.xlu0 %1101
    %1103 = vrot.lane.b32.xlu0 %v990, 96
    %v1104 = vpop.permute.xlu0 %1103
    %1105 = vrot.lane.b32.xlu0 %v991, 96
    %v1106 = vpop.permute.xlu0 %1105
    %1127 = vrot.lane.b32.xlu0 %v972, 32
    %v1128 = vpop.permute.xlu0 %1127
    %1129 = vrot.lane.b32.xlu0 %v973, 32
    %v1130 = vpop.permute.xlu0 %1129
    %1131 = vrot.lane.b32.xlu0 %v974, 32
    %v1132 = vpop.permute.xlu0 %1131
    %1133 = vrot.lane.b32.xlu0 %v975, 32
    %v1134 = vpop.permute.xlu0 %1133
    %1135 = vrot.lane.b32.xlu0 %v976, 32
    %v1136 = vpop.permute.xlu0 %1135
    %1137 = vrot.lane.b32.xlu0 %v977, 32
    %v1138 = vpop.permute.xlu0 %1137
    %1139 = vrot.lane.b32.xlu0 %v978, 32
    %v1140 = vpop.permute.xlu0 %1139
    %1141 = vrot.lane.b32.xlu0 %v979, 32
    %v1142 = vpop.permute.xlu0 %1141
    %1143 = vrot.lane.b32.xlu0 %v980, 32
    %v1144 = vpop.permute.xlu0 %1143
    %1145 = vrot.lane.b32.xlu0 %v981, 32
    %v1146 = vpop.permute.xlu0 %1145
    %1147 = vrot.lane.b32.xlu0 %v982, 32
    %v1148 = vpop.permute.xlu0 %1147
    %1149 = vrot.lane.b32.xlu0 %v983, 32
    %v1150 = vpop.permute.xlu0 %1149
    %1151 = vrot.lane.b32.xlu0 %v984, 32
    %v1152 = vpop.permute.xlu0 %1151
    %1153 = vrot.lane.b32.xlu0 %v985, 32
    %v1154 = vpop.permute.xlu0 %1153
    %1155 = vrot.lane.b32.xlu0 %v986, 32
    %v1156 = vpop.permute.xlu0 %1155
    %1157 = vrot.lane.b32.xlu0 %v987, 32
    %v1158 = vpop.permute.xlu0 %1157
    %1159 = vrot.lane.b32.xlu0 %v988, 32
    %v1160 = vpop.permute.xlu0 %1159
    %1161 = vrot.lane.b32.xlu0 %v989, 32
    %v1162 = vpop.permute.xlu0 %1161
    %1163 = vrot.lane.b32.xlu0 %v990, 32
    %v1164 = vpop.permute.xlu0 %1163
    %1165 = vrot.lane.b32.xlu0 %v991, 32
    %v1166 = vpop.permute.xlu0 %1165
    %v1187 = vsel %vm410, %v1068, %v1128
    %v1188 = vsel %vm410, %v1070, %v1130
    %v1189 = vsel %vm410, %v1072, %v1132
    %v1190 = vsel %vm410, %v1074, %v1134
    %v1191 = vsel %vm410, %v1076, %v1136
    %v1192 = vsel %vm410, %v1078, %v1138
    %v1193 = vsel %vm410, %v1080, %v1140
    %v1194 = vsel %vm410, %v1082, %v1142
    %v1195 = vsel %vm410, %v1084, %v1144
    %v1196 = vsel %vm410, %v1086, %v1146
    %v1197 = vsel %vm410, %v1088, %v1148
    %v1198 = vsel %vm410, %v1090, %v1150
    %v1199 = vsel %vm410, %v1092, %v1152
    %v1200 = vsel %vm410, %v1094, %v1154
    %v1201 = vsel %vm410, %v1096, %v1156
    %v1202 = vsel %vm410, %v1098, %v1158
    %v1203 = vsel %vm410, %v1100, %v1160
    %v1204 = vsel %vm410, %v1102, %v1162
    %v1205 = vsel %vm410, %v1104, %v1164
    %v1206 = vsel %vm410, %v1106, %v1166
    %v1207 = vlaneseq
    %v1208 = vshrl.u32 %v1207, 7
    %v1209 = vsub.s32 0, %v1208
    %v1210 = vrot.slane %v997, %v1209
    %v1211 = vmul.f32 %v640, %v1210
    %v1212 = vmul.f32 %v1187, %v1210
    %v1213 = vmul.f32 %v1188, %v1210
    %v1214 = vmul.f32 %v1189, %v1210
    %v1215 = vmul.f32 %v1190, %v1210
    %v1216 = vmul.f32 %v1191, %v1210
    %v1217 = vmul.f32 %v1192, %v1210
    %v1218 = vmul.f32 %v1193, %v1210
    %v1219 = vmul.f32 %v1194, %v1210
    %v1220 = vmul.f32 %v1195, %v1210
    %v1221 = vmul.f32 %v1196, %v1210
    %v1222 = vmul.f32 %v1197, %v1210
    %v1223 = vmul.f32 %v1198, %v1210
    %v1224 = vmul.f32 %v1199, %v1210
    %v1225 = vmul.f32 %v1200, %v1210
    %v1226 = vmul.f32 %v1201, %v1210
    %v1227 = vmul.f32 %v1202, %v1210
    %v1228 = vmul.f32 %v1203, %v1210
    %v1229 = vmul.f32 %v1204, %v1210
    %v1230 = vmul.f32 %v1205, %v1210
    %v1231 = vmul.f32 %v1206, %v1210
    %v1232 = vadd.f32 %v1023, %v1211
    %v1233 = vadd.f32 %v1024, %v1211
    %v1234 = vadd.f32 %v1025, %v1211
    %v1235 = vadd.f32 %v1026, %v1211
    %v1236 = vadd.f32 %v1027, %v1212
    %v1237 = vadd.f32 %v1028, %v1213
    %v1238 = vadd.f32 %v1029, %v1214
    %v1239 = vadd.f32 %v1030, %v1215
    %v1240 = vadd.f32 %v1031, %v1216
    %v1241 = vadd.f32 %v1032, %v1217
    %v1242 = vadd.f32 %v1033, %v1218
    %v1243 = vadd.f32 %v1034, %v1219
    %v1244 = vadd.f32 %v1035, %v1220
    %v1245 = vadd.f32 %v1036, %v1221
    %v1246 = vadd.f32 %v1037, %v1222
    %v1247 = vadd.f32 %v1038, %v1223
    %v1248 = vadd.f32 %v1039, %v1224
    %v1249 = vadd.f32 %v1040, %v1225
    %v1250 = vadd.f32 %v1041, %v1226
    %v1251 = vadd.f32 %v1042, %v1227
    %v1252 = vadd.f32 %v1043, %v1228
    %v1253 = vadd.f32 %v1044, %v1229
    %v1254 = vadd.f32 %v1045, %v1230
    %v1255 = vadd.f32 %v1046, %v1231
    %v1256 = vld [vmem:[#allocation8 + $0x8] sm:$0x1]
    %v1257 = vld [vmem:[#allocation8 + $0x9] sm:$0x1]
    %v1258 = vlaneseq
    %v1259 = vshrl.u32 %v1258, 7
    %v1260 = vsub.s32 0, %v1259
    %v1261 = vrot.slane %v1256, %v1260
    %v1262 = vmul.f32 %v1261, 0.0
    %v1263 = vmul.f32 %v1232, %v1261
    %v1264 = vmul.f32 %v1233, %v1261
    %v1265 = vmul.f32 %v1234, %v1261
    %v1266 = vmul.f32 %v1235, %v1261
    %v1267 = vmul.f32 %v1236, %v1261
    %v1268 = vmul.f32 %v1237, %v1261
    %v1269 = vmul.f32 %v1238, %v1261
    %v1270 = vmul.f32 %v1239, %v1261
    %v1271 = vmul.f32 %v1240, %v1261
    %v1272 = vmul.f32 %v1241, %v1261
    %v1273 = vmul.f32 %v1242, %v1261
    %v1274 = vmul.f32 %v1243, %v1261
    %v1275 = vmul.f32 %v1244, %v1261
    %v1276 = vmul.f32 %v1245, %v1261
    %v1277 = vmul.f32 %v1246, %v1261
    %v1278 = vmul.f32 %v1247, %v1261
    %v1279 = vadd.f32 %v1232, %v1262
    %v1280 = vadd.f32 %v1233, %v1262
    %v1281 = vadd.f32 %v1234, %v1262
    %v1282 = vadd.f32 %v1235, %v1262
    %v1283 = vadd.f32 %v1236, %v1262
    %v1284 = vadd.f32 %v1237, %v1262
    %v1285 = vadd.f32 %v1238, %v1262
    %v1286 = vadd.f32 %v1239, %v1262
    %v1287 = vadd.f32 %v1240, %v1263
    %v1288 = vadd.f32 %v1241, %v1264
    %v1289 = vadd.f32 %v1242, %v1265
    %v1290 = vadd.f32 %v1243, %v1266
    %v1291 = vadd.f32 %v1244, %v1267
    %v1292 = vadd.f32 %v1245, %v1268
    %v1293 = vadd.f32 %v1246, %v1269
    %v1294 = vadd.f32 %v1247, %v1270
    %v1295 = vadd.f32 %v1248, %v1271
    %v1296 = vadd.f32 %v1249, %v1272
    %v1297 = vadd.f32 %v1250, %v1273
    %v1298 = vadd.f32 %v1251, %v1274
    %v1299 = vadd.f32 %v1252, %v1275
    %v1300 = vadd.f32 %v1253, %v1276
    %v1301 = vadd.f32 %v1254, %v1277
    %v1302 = vadd.f32 %v1255, %v1278
    %1319 = vrot.lane.b32.xlu0 %v1232, 96
    %v1320 = vpop.permute.xlu0 %1319
    %1321 = vrot.lane.b32.xlu0 %v1233, 96
    %v1322 = vpop.permute.xlu0 %1321
    %1323 = vrot.lane.b32.xlu0 %v1234, 96
    %v1324 = vpop.permute.xlu0 %1323
    %1325 = vrot.lane.b32.xlu0 %v1235, 96
    %v1326 = vpop.permute.xlu0 %1325
    %1327 = vrot.lane.b32.xlu0 %v1236, 96
    %v1328 = vpop.permute.xlu0 %1327
    %1329 = vrot.lane.b32.xlu0 %v1237, 96
    %v1330 = vpop.permute.xlu0 %1329
    %1331 = vrot.lane.b32.xlu0 %v1238, 96
    %v1332 = vpop.permute.xlu0 %1331
    %1333 = vrot.lane.b32.xlu0 %v1239, 96
    %v1334 = vpop.permute.xlu0 %1333
    %1335 = vrot.lane.b32.xlu0 %v1240, 96
    %v1336 = vpop.permute.xlu0 %1335
    %1337 = vrot.lane.b32.xlu0 %v1241, 96
    %v1338 = vpop.permute.xlu0 %1337
    %1339 = vrot.lane.b32.xlu0 %v1242, 96
    %v1340 = vpop.permute.xlu0 %1339
    %1341 = vrot.lane.b32.xlu0 %v1243, 96
    %v1342 = vpop.permute.xlu0 %1341
    %1343 = vrot.lane.b32.xlu0 %v1244, 96
    %v1344 = vpop.permute.xlu0 %1343
    %1345 = vrot.lane.b32.xlu0 %v1245, 96
    %v1346 = vpop.permute.xlu0 %1345
    %1347 = vrot.lane.b32.xlu0 %v1246, 96
    %v1348 = vpop.permute.xlu0 %1347
    %1349 = vrot.lane.b32.xlu0 %v1247, 96
    %v1350 = vpop.permute.xlu0 %1349
    %1367 = vrot.lane.b32.xlu0 %v1232, 32
    %v1368 = vpop.permute.xlu0 %1367
    %1369 = vrot.lane.b32.xlu0 %v1233, 32
    %v1370 = vpop.permute.xlu0 %1369
    %1371 = vrot.lane.b32.xlu0 %v1234, 32
    %v1372 = vpop.permute.xlu0 %1371
    %1373 = vrot.lane.b32.xlu0 %v1235, 32
    %v1374 = vpop.permute.xlu0 %1373
    %1375 = vrot.lane.b32.xlu0 %v1236, 32
    %v1376 = vpop.permute.xlu0 %1375
    %1377 = vrot.lane.b32.xlu0 %v1237, 32
    %v1378 = vpop.permute.xlu0 %1377
    %1379 = vrot.lane.b32.xlu0 %v1238, 32
    %v1380 = vpop.permute.xlu0 %1379
    %1381 = vrot.lane.b32.xlu0 %v1239, 32
    %v1382 = vpop.permute.xlu0 %1381
    %1383 = vrot.lane.b32.xlu0 %v1240, 32
    %v1384 = vpop.permute.xlu0 %1383
    %1385 = vrot.lane.b32.xlu0 %v1241, 32
    %v1386 = vpop.permute.xlu0 %1385
    %1387 = vrot.lane.b32.xlu0 %v1242, 32
    %v1388 = vpop.permute.xlu0 %1387
    %1389 = vrot.lane.b32.xlu0 %v1243, 32
    %v1390 = vpop.permute.xlu0 %1389
    %1391 = vrot.lane.b32.xlu0 %v1244, 32
    %v1392 = vpop.permute.xlu0 %1391
    %1393 = vrot.lane.b32.xlu0 %v1245, 32
    %v1394 = vpop.permute.xlu0 %1393
    %1395 = vrot.lane.b32.xlu0 %v1246, 32
    %v1396 = vpop.permute.xlu0 %1395
    %1397 = vrot.lane.b32.xlu0 %v1247, 32
    %v1398 = vpop.permute.xlu0 %1397
    %v1415 = vsel %vm410, %v1320, %v1368
    %v1416 = vsel %vm410, %v1322, %v1370
    %v1417 = vsel %vm410, %v1324, %v1372
    %v1418 = vsel %vm410, %v1326, %v1374
    %v1419 = vsel %vm410, %v1328, %v1376
    %v1420 = vsel %vm410, %v1330, %v1378
    %v1421 = vsel %vm410, %v1332, %v1380
    %v1422 = vsel %vm410, %v1334, %v1382
    %v1423 = vsel %vm410, %v1336, %v1384
    %v1424 = vsel %vm410, %v1338, %v1386
    %v1425 = vsel %vm410, %v1340, %v1388
    %v1426 = vsel %vm410, %v1342, %v1390
    %v1427 = vsel %vm410, %v1344, %v1392
    %v1428 = vsel %vm410, %v1346, %v1394
    %v1429 = vsel %vm410, %v1348, %v1396
    %v1430 = vsel %vm410, %v1350, %v1398
    %v1431 = vlaneseq
    %v1432 = vshrl.u32 %v1431, 7
    %v1433 = vsub.s32 0, %v1432
    %v1434 = vrot.slane %v1257, %v1433
    %v1435 = vmul.f32 %v640, %v1434
    %v1436 = vmul.f32 %v1415, %v1434
    %v1437 = vmul.f32 %v1416, %v1434
    %v1438 = vmul.f32 %v1417, %v1434
    %v1439 = vmul.f32 %v1418, %v1434
    %v1440 = vmul.f32 %v1419, %v1434
    %v1441 = vmul.f32 %v1420, %v1434
    %v1442 = vmul.f32 %v1421, %v1434
    %v1443 = vmul.f32 %v1422, %v1434
    %v1444 = vmul.f32 %v1423, %v1434
    %v1445 = vmul.f32 %v1424, %v1434
    %v1446 = vmul.f32 %v1425, %v1434
    %v1447 = vmul.f32 %v1426, %v1434
    %v1448 = vmul.f32 %v1427, %v1434
    %v1449 = vmul.f32 %v1428, %v1434
    %v1450 = vmul.f32 %v1429, %v1434
    %v1451 = vmul.f32 %v1430, %v1434
    %v1452 = vadd.f32 %v1279, %v1435
    %v1453 = vadd.f32 %v1280, %v1435
    %v1454 = vadd.f32 %v1281, %v1435
    %v1455 = vadd.f32 %v1282, %v1435
    %v1456 = vadd.f32 %v1283, %v1435
    %v1457 = vadd.f32 %v1284, %v1435
    %v1458 = vadd.f32 %v1285, %v1435
    %v1459 = vadd.f32 %v1286, %v1435
    %v1460 = vadd.f32 %v1287, %v1436
    %v1461 = vadd.f32 %v1288, %v1437
    %v1462 = vadd.f32 %v1289, %v1438
    %v1463 = vadd.f32 %v1290, %v1439
    %v1464 = vadd.f32 %v1291, %v1440
    %v1465 = vadd.f32 %v1292, %v1441
    %v1466 = vadd.f32 %v1293, %v1442
    %v1467 = vadd.f32 %v1294, %v1443
    %v1468 = vadd.f32 %v1295, %v1444
    %v1469 = vadd.f32 %v1296, %v1445
    %v1470 = vadd.f32 %v1297, %v1446
    %v1471 = vadd.f32 %v1298, %v1447
    %v1472 = vadd.f32 %v1299, %v1448
    %v1473 = vadd.f32 %v1300, %v1449
    %v1474 = vadd.f32 %v1301, %v1450
    %v1475 = vadd.f32 %v1302, %v1451
    %v1476 = vld [vmem:[#allocation8 + $0xa] sm:$0x1]
    %v1477 = vld [vmem:[#allocation8 + $0xb] sm:$0x1]
    %v1478 = vlaneseq
    %v1479 = vshrl.u32 %v1478, 7
    %v1480 = vsub.s32 0, %v1479
    %v1481 = vrot.slane %v1476, %v1480
    %v1482 = vmul.f32 %v1481, 0.0
    %v1483 = vmul.f32 %v1452, %v1481
    %v1484 = vmul.f32 %v1453, %v1481
    %v1485 = vmul.f32 %v1454, %v1481
    %v1486 = vmul.f32 %v1455, %v1481
    %v1487 = vmul.f32 %v1456, %v1481
    %v1488 = vmul.f32 %v1457, %v1481
    %v1489 = vmul.f32 %v1458, %v1481
    %v1490 = vmul.f32 %v1459, %v1481
    %v1491 = vadd.f32 %v1452, %v1482
    %v1492 = vadd.f32 %v1453, %v1482
    %v1493 = vadd.f32 %v1454, %v1482
    %v1494 = vadd.f32 %v1455, %v1482
    %v1495 = vadd.f32 %v1456, %v1482
    %v1496 = vadd.f32 %v1457, %v1482
    %v1497 = vadd.f32 %v1458, %v1482
    %v1498 = vadd.f32 %v1459, %v1482
    %v1499 = vadd.f32 %v1460, %v1482
    %v1500 = vadd.f32 %v1461, %v1482
    %v1501 = vadd.f32 %v1462, %v1482
    %v1502 = vadd.f32 %v1463, %v1482
    %v1503 = vadd.f32 %v1464, %v1482
    %v1504 = vadd.f32 %v1465, %v1482
    %v1505 = vadd.f32 %v1466, %v1482
    %v1506 = vadd.f32 %v1467, %v1482
    %v1507 = vadd.f32 %v1468, %v1483
    %v1508 = vadd.f32 %v1469, %v1484
    %v1509 = vadd.f32 %v1470, %v1485
    %v1510 = vadd.f32 %v1471, %v1486
    %v1511 = vadd.f32 %v1472, %v1487
    %v1512 = vadd.f32 %v1473, %v1488
    %v1513 = vadd.f32 %v1474, %v1489
    %v1514 = vadd.f32 %v1475, %v1490
    %1523 = vrot.lane.b32.xlu0 %v1452, 96
    %v1524 = vpop.permute.xlu0 %1523
    %1525 = vrot.lane.b32.xlu0 %v1453, 96
    %v1526 = vpop.permute.xlu0 %1525
    %1527 = vrot.lane.b32.xlu0 %v1454, 96
    %v1528 = vpop.permute.xlu0 %1527
    %1529 = vrot.lane.b32.xlu0 %v1455, 96
    %v1530 = vpop.permute.xlu0 %1529
    %1531 = vrot.lane.b32.xlu0 %v1456, 96
    %v1532 = vpop.permute.xlu0 %1531
    %1533 = vrot.lane.b32.xlu0 %v1457, 96
    %v1534 = vpop.permute.xlu0 %1533
    %1535 = vrot.lane.b32.xlu0 %v1458, 96
    %v1536 = vpop.permute.xlu0 %1535
    %1537 = vrot.lane.b32.xlu0 %v1459, 96
    %v1538 = vpop.permute.xlu0 %1537
    %1547 = vrot.lane.b32.xlu0 %v1452, 32
    %v1548 = vpop.permute.xlu0 %1547
    %1549 = vrot.lane.b32.xlu0 %v1453, 32
    %v1550 = vpop.permute.xlu0 %1549
    %1551 = vrot.lane.b32.xlu0 %v1454, 32
    %v1552 = vpop.permute.xlu0 %1551
    %1553 = vrot.lane.b32.xlu0 %v1455, 32
    %v1554 = vpop.permute.xlu0 %1553
    %1555 = vrot.lane.b32.xlu0 %v1456, 32
    %v1556 = vpop.permute.xlu0 %1555
    %1557 = vrot.lane.b32.xlu0 %v1457, 32
    %v1558 = vpop.permute.xlu0 %1557
    %1559 = vrot.lane.b32.xlu0 %v1458, 32
    %v1560 = vpop.permute.xlu0 %1559
    %1561 = vrot.lane.b32.xlu0 %v1459, 32
    %v1562 = vpop.permute.xlu0 %1561
    %v1571 = vsel %vm410, %v1524, %v1548
    %v1572 = vsel %vm410, %v1526, %v1550
    %v1573 = vsel %vm410, %v1528, %v1552
    %v1574 = vsel %vm410, %v1530, %v1554
    %v1575 = vsel %vm410, %v1532, %v1556
    %v1576 = vsel %vm410, %v1534, %v1558
    %v1577 = vsel %vm410, %v1536, %v1560
    %v1578 = vsel %vm410, %v1538, %v1562
    %v1579 = vlaneseq
    %v1580 = vshrl.u32 %v1579, 7
    %v1581 = vsub.s32 0, %v1580
    %v1582 = vrot.slane %v1477, %v1581
    %v1583 = vmul.f32 %v640, %v1582
    %v1584 = vmul.f32 %v1571, %v1582
    %v1585 = vmul.f32 %v1572, %v1582
    %v1586 = vmul.f32 %v1573, %v1582
    %v1587 = vmul.f32 %v1574, %v1582
    %v1588 = vmul.f32 %v1575, %v1582
    %v1589 = vmul.f32 %v1576, %v1582
    %v1590 = vmul.f32 %v1577, %v1582
    %v1591 = vmul.f32 %v1578, %v1582
    %v1592 = vadd.f32 %v1491, %v1583
    %v1593 = vadd.f32 %v1492, %v1583
    %v1594 = vadd.f32 %v1493, %v1583
    %v1595 = vadd.f32 %v1494, %v1583
    %v1596 = vadd.f32 %v1495, %v1583
    %v1597 = vadd.f32 %v1496, %v1583
    %v1598 = vadd.f32 %v1497, %v1583
    %v1599 = vadd.f32 %v1498, %v1583
    %v1600 = vadd.f32 %v1499, %v1583
    %v1601 = vadd.f32 %v1500, %v1583
    %v1602 = vadd.f32 %v1501, %v1583
    %v1603 = vadd.f32 %v1502, %v1583
    %v1604 = vadd.f32 %v1503, %v1583
    %v1605 = vadd.f32 %v1504, %v1583
    %v1606 = vadd.f32 %v1505, %v1583
    %v1607 = vadd.f32 %v1506, %v1583
    %v1608 = vadd.f32 %v1507, %v1584
    %v1609 = vadd.f32 %v1508, %v1585
    %v1610 = vadd.f32 %v1509, %v1586
    %v1611 = vadd.f32 %v1510, %v1587
    %v1612 = vadd.f32 %v1511, %v1588
    %v1613 = vadd.f32 %v1512, %v1589
    %v1614 = vadd.f32 %v1513, %v1590
    %v1615 = vadd.f32 %v1514, %v1591
    %vm1616 = vcmask 523264
    %1617 = vst.msk [vmem:[#allocation2] sm:$0xff] %vm1616, %v1615
    %v1618 = vld [vmem:[#allocation11] sm:$0xff]
    %v1619 = vld [vmem:[#allocation11 + $0x8] sm:$0xff]
    %v1620 = vld [vmem:[#allocation11 + $0x10] sm:$0xff]
    %v1621 = vld [vmem:[#allocation11 + $0x18] sm:$0xff]
    %v1622 = vld [vmem:[#allocation11 + $0x20] sm:$0xff]
    %v1623 = vld [vmem:[#allocation11 + $0x28] sm:$0xff]
    %v1624 = vld [vmem:[#allocation11 + $0x30] sm:$0xff]
    %v1625 = vld [vmem:[#allocation11 + $0x38] sm:$0xff]
    %v1626 = vld [vmem:[#allocation12] sm:$0xf]
    %v1628 = vsel %vm207, %v1626, 0
    %1630 = vmatprep.subr.mxu0 0.0
    %1631 = vmatpush1.msra.mxu0 %v1628
    %1632 = vmatprep.subr.mxu0 0.0
    %1633 = vmatpush1.msra.mxu0 0.0
    %1634 = vmatprep.subr.mxu0 0.0
    %1635 = vmatpush1.msra.mxu0 0.0
    %1636 = vmatprep.subr.mxu0 0.0
    %1637 = vmatpush1.msra.mxu0 0.0
    %1638 = vmatprep.subr.mxu0 0.0
    %1639 = vmatpush1.msra.mxu0 0.0
    %1640 = vmatprep.subr.mxu0 0.0
    %1641 = vmatpush1.msra.mxu0 0.0
    %1642 = vmatprep.subr.mxu0 0.0
    %1643 = vmatpush1.msra.mxu0 0.0
    %1644 = vmatprep.subr.mxu0 0.0
    %1645 = vmatpush1.msra.mxu0 0.0
    %1646 = vmatprep.subr.mxu0 0.0
    %1647 = vmatpush1.msra.mxu0 0.0
    %1648 = vmatprep.subr.mxu0 0.0
    %1649 = vmatpush1.msra.mxu0 0.0
    %1650 = vmatprep.subr.mxu0 0.0
    %1651 = vmatpush1.msra.mxu0 0.0
    %1652 = vmatprep.subr.mxu0 0.0
    %1653 = vmatpush1.msra.mxu0 0.0
    %1654 = vmatprep.subr.mxu0 0.0
    %1655 = vmatpush1.msra.mxu0 0.0
    %1656 = vmatprep.subr.mxu0 0.0
    %1657 = vmatpush1.msra.mxu0 0.0
    %1658 = vmatprep.subr.mxu0 0.0
    %1659 = vmatpush1.msra.mxu0 0.0
    %1660 = vmatprep.subr.mxu0 0.0
    %1661 = vmatpush1.msra.mxu0 0.0
    %1662 = vmatprep.subr.mxu0 0.0
    %1663 = vmatpush1.msra.mxu0 0.0
    %1664 = vmatprep.subr.mxu0 0.0
    %1665 = vmatpush1.msra.mxu0 0.0
    %1666 = vmatprep.subr.mxu0 0.0
    %1667 = vmatpush1.msra.mxu0 0.0
    %1668 = vmatprep.subr.mxu0 0.0
    %1669 = vmatpush1.msra.mxu0 0.0
    %1670 = vmatprep.subr.mxu0 0.0
    %1671 = vmatpush1.msra.mxu0 0.0
    %1672 = vmatprep.subr.mxu0 0.0
    %1673 = vmatpush1.msra.mxu0 0.0
    %1674 = vmatprep.subr.mxu0 0.0
    %1675 = vmatpush1.msra.mxu0 0.0
    %1676 = vmatprep.subr.mxu0 0.0
    %1677 = vmatpush1.msra.mxu0 0.0
    %1678 = vmatprep.subr.mxu0 0.0
    %1679 = vmatpush1.msra.mxu0 0.0
    %1680 = vmatprep.subr.mxu0 0.0
    %1681 = vmatpush1.msra.mxu0 0.0
    %1682 = vmatprep.subr.mxu0 0.0
    %1683 = vmatpush1.msra.mxu0 0.0
    %1684 = vmatprep.subr.mxu0 0.0
    %1685 = vmatpush1.msra.mxu0 0.0
    %1686 = vmatprep.subr.mxu0 0.0
    %1687 = vmatpush1.msra.mxu0 0.0
    %1688 = vmatprep.subr.mxu0 0.0
    %1689 = vmatpush1.msra.mxu0 0.0
    %1690 = vmatprep.subr.mxu0 0.0
    %1691 = vmatpush1.msra.mxu0 0.0
    %1692 = vmatprep.subr.mxu0 0.0
    %1693 = vmatpush1.msra.mxu0 0.0
    %1694 = vmatprep.mubr.f32.mxu0 0.0
    %1695 = vmatmul.mubr.f32.gmra.mrb[0].mxu0 %v136
    %v1696 = vpop.f32.mrb[0].mxu0
    %v1697 = vadd.f32 0.0, %v1696
    %v1698 = vpop.f32.mrb[0].mxu0
    %1699 = vmatprep.mubr.f32.mxu0 0.0
    %1700 = vmatmul.mubr.f32.gmra.mrb[0].mxu0 %v139
    %v1701 = vpop.f32.mrb[0].mxu0
    %v1702 = vadd.f32 0.0, %v1701
    %v1703 = vpop.f32.mrb[0].mxu0
    %1704 = vmatprep.mubr.f32.mxu0 0.0
    %1705 = vmatmul.mubr.f32.gmra.mrb[0].mxu0 %v142
    %v1706 = vpop.f32.mrb[0].mxu0
    %v1707 = vadd.f32 0.0, %v1706
    %v1708 = vpop.f32.mrb[0].mxu0
    %1709 = vmatprep.mubr.f32.mxu0 0.0
    %1710 = vmatmul.mubr.f32.gmra.mrb[0].mxu0 %v145
    %v1711 = vpop.f32.mrb[0].mxu0
    %v1712 = vadd.f32 0.0, %v1711
    %v1713 = vpop.f32.mrb[0].mxu0
    %1714 = vmatprep.mubr.f32.mxu0 0.0
    %1715 = vmatmul.mubr.f32.gmra.mrb[0].mxu0 %v148
    %v1716 = vpop.f32.mrb[0].mxu0
    %v1717 = vadd.f32 0.0, %v1716
    %v1718 = vpop.f32.mrb[0].mxu0
    %1719 = vmatprep.mubr.f32.mxu0 0.0
    %1720 = vmatmul.mubr.f32.gmra.mrb[0].mxu0 %v151
    %v1721 = vpop.f32.mrb[0].mxu0
    %v1722 = vadd.f32 0.0, %v1721
    %v1723 = vpop.f32.mrb[0].mxu0
    %1724 = vmatprep.mubr.f32.mxu0 0.0
    %1725 = vmatmul.mubr.f32.gmra.mrb[0].mxu0 %v154
    %v1726 = vpop.f32.mrb[0].mxu0
    %v1727 = vadd.f32 0.0, %v1726
    %v1728 = vpop.f32.mrb[0].mxu0
    %1729 = vmatprep.mubr.f32.mxu0 0.0
    %1730 = vmatmul.mubr.f32.gmra.mrb[0].mxu0 %v157
    %v1731 = vpop.f32.mrb[0].mxu0
    %v1732 = vadd.f32 0.0, %v1731
    %v1733 = vpop.f32.mrb[0].mxu0
    %1734 = vmatprep.mubr.f32.mxu0 0.0
    %1735 = vmatmul.mubr.f32.gmra.mrb[0].mxu0 %v160
    %v1736 = vpop.f32.mrb[0].mxu0
    %v1737 = vadd.f32 0.0, %v1736
    %v1738 = vpop.f32.mrb[0].mxu0
    %1739 = vmatprep.mubr.f32.mxu0 0.0
    %1740 = vmatmul.mubr.f32.gmra.mrb[0].mxu0 %v163
    %v1741 = vpop.f32.mrb[0].mxu0
    %v1742 = vadd.f32 0.0, %v1741
    %v1743 = vpop.f32.mrb[0].mxu0
    %1744 = vmatprep.mubr.f32.mxu0 0.0
    %1745 = vmatmul.mubr.f32.gmra.mrb[0].mxu0 %v166
    %v1746 = vpop.f32.mrb[0].mxu0
    %v1747 = vadd.f32 0.0, %v1746
    %v1748 = vpop.f32.mrb[0].mxu0
    %1749 = vmatprep.mubr.f32.mxu0 0.0
    %1750 = vmatmul.mubr.f32.gmra.mrb[0].mxu0 %v169
    %v1751 = vpop.f32.mrb[0].mxu0
    %v1752 = vadd.f32 0.0, %v1751
    %v1753 = vpop.f32.mrb[0].mxu0
    %1754 = vmatprep.mubr.f32.mxu0 0.0
    %1755 = vmatmul.mubr.f32.gmra.mrb[0].mxu0 %v172
    %v1756 = vpop.f32.mrb[0].mxu0
    %v1757 = vadd.f32 0.0, %v1756
    %v1758 = vpop.f32.mrb[0].mxu0
    %1759 = vmatprep.mubr.f32.mxu0 0.0
    %1760 = vmatmul.mubr.f32.gmra.mrb[0].mxu0 %v175
    %v1761 = vpop.f32.mrb[0].mxu0
    %v1762 = vadd.f32 0.0, %v1761
    %v1763 = vpop.f32.mrb[0].mxu0
    %1764 = vmatprep.mubr.f32.mxu0 0.0
    %1765 = vmatmul.mubr.f32.gmra.mrb[0].mxu0 %v178
    %v1766 = vpop.f32.mrb[0].mxu0
    %v1767 = vadd.f32 0.0, %v1766
    %v1768 = vpop.f32.mrb[0].mxu0
    %1769 = vmatprep.mubr.f32.mxu0 0.0
    %1770 = vmatmul.mubr.f32.gmra.mrb[0].mxu0 %v181
    %v1771 = vpop.f32.mrb[0].mxu0
    %v1772 = vadd.f32 0.0, %v1771
    %v1773 = vpop.f32.mrb[0].mxu0
    %1774 = vmatprep.mubr.f32.mxu0 0.0
    %1775 = vmatmul.mubr.f32.gmra.mrb[0].mxu0 %v184
    %v1776 = vpop.f32.mrb[0].mxu0
    %v1777 = vadd.f32 0.0, %v1776
    %v1778 = vpop.f32.mrb[0].mxu0
    %1779 = vmatprep.mubr.f32.mxu0 0.0
    %1780 = vmatmul.mubr.f32.gmra.mrb[0].mxu0 %v187
    %v1781 = vpop.f32.mrb[0].mxu0
    %v1782 = vadd.f32 0.0, %v1781
    %v1783 = vpop.f32.mrb[0].mxu0
    %1784 = vmatprep.mubr.f32.mxu0 0.0
    %1785 = vmatmul.mubr.f32.gmra.mrb[0].mxu0 %v190
    %v1786 = vpop.f32.mrb[0].mxu0
    %v1787 = vadd.f32 0.0, %v1786
    %v1788 = vpop.f32.mrb[0].mxu0
    %1789 = vmatprep.mubr.f32.mxu0 0.0
    %1790 = vmatmul.mubr.f32.gmra.mrb[0].mxu0 %v193
    %v1791 = vpop.f32.mrb[0].mxu0
    %v1792 = vadd.f32 0.0, %v1791
    %v1793 = vpop.f32.mrb[0].mxu0
    %1794 = vmatprep.mubr.f32.mxu0 0.0
    %1795 = vmatmul.mubr.f32.gmra.mrb[0].mxu0 %v196
    %v1796 = vpop.f32.mrb[0].mxu0
    %v1797 = vadd.f32 0.0, %v1796
    %v1798 = vpop.f32.mrb[0].mxu0
    %1799 = vmatprep.mubr.f32.mxu0 0.0
    %1800 = vmatmul.mubr.f32.gmra.mrb[0].mxu0 %v199
    %v1801 = vpop.f32.mrb[0].mxu0
    %v1802 = vadd.f32 0.0, %v1801
    %v1803 = vpop.f32.mrb[0].mxu0
    %1804 = vmatprep.mubr.f32.mxu0 0.0
    %1805 = vmatmul.mubr.f32.gmra.mrb[0].mxu0 %v202
    %v1806 = vpop.f32.mrb[0].mxu0
    %v1807 = vadd.f32 0.0, %v1806
    %v1808 = vpop.f32.mrb[0].mxu0
    %1809 = vmatprep.mubr.f32.mxu0 0.0
    %1810 = vmatmul.mubr.f32.gmra.mrb[0].mxu0 %v205
    %v1811 = vpop.f32.mrb[0].mxu0
    %v1812 = vadd.f32 0.0, %v1811
    %v1813 = vpop.f32.mrb[0].mxu0
    %1814 = vdwg.mxu0
    %v1816 = vsel %vm1616, %v1592, 0
    %v1819 = vsel %vm1616, %v1593, 0
    %v1822 = vsel %vm1616, %v1594, 0
    %v1825 = vsel %vm1616, %v1595, 0
    %v1828 = vsel %vm1616, %v1596, 0
    %v1831 = vsel %vm1616, %v1597, 0
    %v1834 = vsel %vm1616, %v1598, 0
    %v1837 = vsel %vm1616, %v1599, 0
    %v1840 = vsel %vm1616, %v1600, 0
    %v1843 = vsel %vm1616, %v1601, 0
    %v1846 = vsel %vm1616, %v1602, 0
    %v1849 = vsel %vm1616, %v1603, 0
    %v1852 = vsel %vm1616, %v1604, 0
    %v1855 = vsel %vm1616, %v1605, 0
    %v1858 = vsel %vm1616, %v1606, 0
    %v1861 = vsel %vm1616, %v1607, 0
    %v1864 = vsel %vm1616, %v1608, 0
    %v1867 = vsel %vm1616, %v1609, 0
    %v1870 = vsel %vm1616, %v1610, 0
    %v1873 = vsel %vm1616, %v1611, 0
    %v1876 = vsel %vm1616, %v1612, 0
    %v1879 = vsel %vm1616, %v1613, 0
    %v1882 = vsel %vm1616, %v1614, 0
    %v1885 = vsel %vm1616, %v1615, 0
    %1887 = vmatprep.subr.mxu0 0.0
    %1888 = vmatpush1.msra.mxu0 %v1618
    %1889 = vmatprep.subr.mxu0 0.0
    %1890 = vmatpush1.msra.mxu0 %v1619
    %1891 = vmatprep.subr.mxu0 0.0
    %1892 = vmatpush1.msra.mxu0 %v1620
    %1893 = vmatprep.subr.mxu0 0.0
    %1894 = vmatpush1.msra.mxu0 %v1621
    %1895 = vmatprep.subr.mxu0 0.0
    %1896 = vmatpush1.msra.mxu0 %v1622
    %1897 = vmatprep.subr.mxu0 0.0
    %1898 = vmatpush1.msra.mxu0 %v1623
    %1899 = vmatprep.subr.mxu0 0.0
    %1900 = vmatpush1.msra.mxu0 %v1624
    %1901 = vmatprep.subr.mxu0 0.0
    %1902 = vmatpush1.msra.mxu0 %v1625
    %1903 = vmatprep.subr.mxu0 0.0
    %1904 = vmatpush1.msra.mxu0 0.0
    %1905 = vmatprep.subr.mxu0 0.0
    %1906 = vmatpush1.msra.mxu0 0.0
    %1907 = vmatprep.subr.mxu0 0.0
    %1908 = vmatpush1.msra.mxu0 0.0
    %1909 = vmatprep.subr.mxu0 0.0
    %1910 = vmatpush1.msra.mxu0 0.0
    %1911 = vmatprep.subr.mxu0 0.0
    %1912 = vmatpush1.msra.mxu0 0.0
    %1913 = vmatprep.subr.mxu0 0.0
    %1914 = vmatpush1.msra.mxu0 0.0
    %1915 = vmatprep.subr.mxu0 0.0
    %1916 = vmatpush1.msra.mxu0 0.0
    %1917 = vmatprep.subr.mxu0 0.0
    %1918 = vmatpush1.msra.mxu0 0.0
    %1919 = vmatprep.subr.mxu0 0.0
    %1920 = vmatpush1.msra.mxu0 0.0
    %1921 = vmatprep.subr.mxu0 0.0
    %1922 = vmatpush1.msra.mxu0 0.0
    %1923 = vmatprep.subr.mxu0 0.0
    %1924 = vmatpush1.msra.mxu0 0.0
    %1925 = vmatprep.subr.mxu0 0.0
    %1926 = vmatpush1.msra.mxu0 0.0
    %1927 = vmatprep.subr.mxu0 0.0
    %1928 = vmatpush1.msra.mxu0 0.0
    %1929 = vmatprep.subr.mxu0 0.0
    %1930 = vmatpush1.msra.mxu0 0.0
    %1931 = vmatprep.subr.mxu0 0.0
    %1932 = vmatpush1.msra.mxu0 0.0
    %1933 = vmatprep.subr.mxu0 0.0
    %1934 = vmatpush1.msra.mxu0 0.0
    %1935 = vmatprep.subr.mxu0 0.0
    %1936 = vmatpush1.msra.mxu0 0.0
    %1937 = vmatprep.subr.mxu0 0.0
    %1938 = vmatpush1.msra.mxu0 0.0
    %1939 = vmatprep.subr.mxu0 0.0
    %1940 = vmatpush1.msra.mxu0 0.0
    %1941 = vmatprep.subr.mxu0 0.0
    %1942 = vmatpush1.msra.mxu0 0.0
    %1943 = vmatprep.subr.mxu0 0.0
    %1944 = vmatpush1.msra.mxu0 0.0
    %1945 = vmatprep.subr.mxu0 0.0
    %1946 = vmatpush1.msra.mxu0 0.0
    %1947 = vmatprep.subr.mxu0 0.0
    %1948 = vmatpush1.msra.mxu0 0.0
    %1949 = vmatprep.subr.mxu0 0.0
    %1950 = vmatpush1.msra.mxu0 0.0
    %1951 = vmatprep.mubr.f32.mxu0 0.0
    %1952 = vmatmul.mubr.f32.gmra.mrb[0].mxu0 %v1816
    %v1953 = vpop.f32.mrb[0].mxu0
    %v1954 = vadd.f32 %v1697, %v1953
    %v1955 = vpop.f32.mrb[0].mxu0
    %1956 = vmatprep.mubr.f32.mxu0 0.0
    %1957 = vmatmul.mubr.f32.gmra.mrb[0].mxu0 %v1819
    %v1958 = vpop.f32.mrb[0].mxu0
    %v1959 = vadd.f32 %v1702, %v1958
    %v1960 = vpop.f32.mrb[0].mxu0
    %1961 = vmatprep.mubr.f32.mxu0 0.0
    %1962 = vmatmul.mubr.f32.gmra.mrb[0].mxu0 %v1822
    %v1963 = vpop.f32.mrb[0].mxu0
    %v1964 = vadd.f32 %v1707, %v1963
    %v1965 = vpop.f32.mrb[0].mxu0
    %1966 = vmatprep.mubr.f32.mxu0 0.0
    %1967 = vmatmul.mubr.f32.gmra.mrb[0].mxu0 %v1825
    %v1968 = vpop.f32.mrb[0].mxu0
    %v1969 = vadd.f32 %v1712, %v1968
    %v1970 = vpop.f32.mrb[0].mxu0
    %1971 = vmatprep.mubr.f32.mxu0 0.0
    %1972 = vmatmul.mubr.f32.gmra.mrb[0].mxu0 %v1828
    %v1973 = vpop.f32.mrb[0].mxu0
    %v1974 = vadd.f32 %v1717, %v1973
    %v1975 = vpop.f32.mrb[0].mxu0
    %1976 = vmatprep.mubr.f32.mxu0 0.0
    %1977 = vmatmul.mubr.f32.gmra.mrb[0].mxu0 %v1831
    %v1978 = vpop.f32.mrb[0].mxu0
    %v1979 = vadd.f32 %v1722, %v1978
    %v1980 = vpop.f32.mrb[0].mxu0
    %1981 = vmatprep.mubr.f32.mxu0 0.0
    %1982 = vmatmul.mubr.f32.gmra.mrb[0].mxu0 %v1834
    %v1983 = vpop.f32.mrb[0].mxu0
    %v1984 = vadd.f32 %v1727, %v1983
    %v1985 = vpop.f32.mrb[0].mxu0
    %1986 = vmatprep.mubr.f32.mxu0 0.0
    %1987 = vmatmul.mubr.f32.gmra.mrb[0].mxu0 %v1837
    %v1988 = vpop.f32.mrb[0].mxu0
    %v1989 = vadd.f32 %v1732, %v1988
    %v1990 = vpop.f32.mrb[0].mxu0
    %1991 = vmatprep.mubr.f32.mxu0 0.0
    %1992 = vmatmul.mubr.f32.gmra.mrb[0].mxu0 %v1840
    %v1993 = vpop.f32.mrb[0].mxu0
    %v1994 = vadd.f32 %v1737, %v1993
    %v1995 = vpop.f32.mrb[0].mxu0
    %1996 = vmatprep.mubr.f32.mxu0 0.0
    %1997 = vmatmul.mubr.f32.gmra.mrb[0].mxu0 %v1843
    %v1998 = vpop.f32.mrb[0].mxu0
    %v1999 = vadd.f32 %v1742, %v1998
    %v2000 = vpop.f32.mrb[0].mxu0
    %2001 = vmatprep.mubr.f32.mxu0 0.0
    %2002 = vmatmul.mubr.f32.gmra.mrb[0].mxu0 %v1846
    %v2003 = vpop.f32.mrb[0].mxu0
    %v2004 = vadd.f32 %v1747, %v2003
    %v2005 = vpop.f32.mrb[0].mxu0
    %2006 = vmatprep.mubr.f32.mxu0 0.0
    %2007 = vmatmul.mubr.f32.gmra.mrb[0].mxu0 %v1849
    %v2008 = vpop.f32.mrb[0].mxu0
    %v2009 = vadd.f32 %v1752, %v2008
    %v2010 = vpop.f32.mrb[0].mxu0
    %2011 = vmatprep.mubr.f32.mxu0 0.0
    %2012 = vmatmul.mubr.f32.gmra.mrb[0].mxu0 %v1852
    %v2013 = vpop.f32.mrb[0].mxu0
    %v2014 = vadd.f32 %v1757, %v2013
    %v2015 = vpop.f32.mrb[0].mxu0
    %2016 = vmatprep.mubr.f32.mxu0 0.0
    %2017 = vmatmul.mubr.f32.gmra.mrb[0].mxu0 %v1855
    %v2018 = vpop.f32.mrb[0].mxu0
    %v2019 = vadd.f32 %v1762, %v2018
    %v2020 = vpop.f32.mrb[0].mxu0
    %2021 = vmatprep.mubr.f32.mxu0 0.0
    %2022 = vmatmul.mubr.f32.gmra.mrb[0].mxu0 %v1858
    %v2023 = vpop.f32.mrb[0].mxu0
    %v2024 = vadd.f32 %v1767, %v2023
    %v2025 = vpop.f32.mrb[0].mxu0
    %2026 = vmatprep.mubr.f32.mxu0 0.0
    %2027 = vmatmul.mubr.f32.gmra.mrb[0].mxu0 %v1861
    %v2028 = vpop.f32.mrb[0].mxu0
    %v2029 = vadd.f32 %v1772, %v2028
    %v2030 = vpop.f32.mrb[0].mxu0
    %2031 = vmatprep.mubr.f32.mxu0 0.0
    %2032 = vmatmul.mubr.f32.gmra.mrb[0].mxu0 %v1864
    %v2033 = vpop.f32.mrb[0].mxu0
    %v2034 = vadd.f32 %v1777, %v2033
    %v2035 = vpop.f32.mrb[0].mxu0
    %2036 = vmatprep.mubr.f32.mxu0 0.0
    %2037 = vmatmul.mubr.f32.gmra.mrb[0].mxu0 %v1867
    %v2038 = vpop.f32.mrb[0].mxu0
    %v2039 = vadd.f32 %v1782, %v2038
    %v2040 = vpop.f32.mrb[0].mxu0
    %2041 = vmatprep.mubr.f32.mxu0 0.0
    %2042 = vmatmul.mubr.f32.gmra.mrb[0].mxu0 %v1870
    %v2043 = vpop.f32.mrb[0].mxu0
    %v2044 = vadd.f32 %v1787, %v2043
    %v2045 = vpop.f32.mrb[0].mxu0
    %2046 = vmatprep.mubr.f32.mxu0 0.0
    %2047 = vmatmul.mubr.f32.gmra.mrb[0].mxu0 %v1873
    %v2048 = vpop.f32.mrb[0].mxu0
    %v2049 = vadd.f32 %v1792, %v2048
    %v2050 = vpop.f32.mrb[0].mxu0
    %2051 = vmatprep.mubr.f32.mxu0 0.0
    %2052 = vmatmul.mubr.f32.gmra.mrb[0].mxu0 %v1876
    %v2053 = vpop.f32.mrb[0].mxu0
    %v2054 = vadd.f32 %v1797, %v2053
    %v2055 = vpop.f32.mrb[0].mxu0
    %2056 = vmatprep.mubr.f32.mxu0 0.0
    %2057 = vmatmul.mubr.f32.gmra.mrb[0].mxu0 %v1879
    %v2058 = vpop.f32.mrb[0].mxu0
    %v2059 = vadd.f32 %v1802, %v2058
    %v2060 = vpop.f32.mrb[0].mxu0
    %2061 = vmatprep.mubr.f32.mxu0 0.0
    %2062 = vmatmul.mubr.f32.gmra.mrb[0].mxu0 %v1882
    %v2063 = vpop.f32.mrb[0].mxu0
    %v2064 = vadd.f32 %v1807, %v2063
    %v2065 = vpop.f32.mrb[0].mxu0
    %2066 = vmatprep.mubr.f32.mxu0 0.0
    %2067 = vmatmul.mubr.f32.gmra.mrb[0].mxu0 %v1885
    %v2068 = vpop.f32.mrb[0].mxu0
    %v2069 = vadd.f32 %v1812, %v2068
    %v2070 = vpop.f32.mrb[0].mxu0
    %2071 = vdwg.mxu0
    %vm2072 = vcmask 64512
    %2073 = vst.msk [vmem:[#allocation14] sm:$0xff] %vm2072, %v1954
    %2074 = vst.msk [vmem:[#allocation14 + $0x8] sm:$0xff] %vm2072, %v1959
    %2075 = vst.msk [vmem:[#allocation14 + $0x10] sm:$0xff] %vm2072, %v1964
    %2076 = vst.msk [vmem:[#allocation14 + $0x18] sm:$0xff] %vm2072, %v1969
    %2077 = vst.msk [vmem:[#allocation14 + $0x20] sm:$0xff] %vm2072, %v1974
    %2078 = vst.msk [vmem:[#allocation14 + $0x28] sm:$0xff] %vm2072, %v1979
    %2079 = vst.msk [vmem:[#allocation14 + $0x30] sm:$0xff] %vm2072, %v1984
    %2080 = vst.msk [vmem:[#allocation14 + $0x38] sm:$0xff] %vm2072, %v1989
    %2081 = vst.msk [vmem:[#allocation14 + $0x40] sm:$0xff] %vm2072, %v1994
    %2082 = vst.msk [vmem:[#allocation14 + $0x48] sm:$0xff] %vm2072, %v1999
    %2083 = vst.msk [vmem:[#allocation14 + $0x50] sm:$0xff] %vm2072, %v2004
    %2084 = vst.msk [vmem:[#allocation14 + $0x58] sm:$0xff] %vm2072, %v2009
    %2085 = vst.msk [vmem:[#allocation14 + $0x60] sm:$0xff] %vm2072, %v2014
    %2086 = vst.msk [vmem:[#allocation14 + $0x68] sm:$0xff] %vm2072, %v2019
    %2087 = vst.msk [vmem:[#allocation14 + $0x70] sm:$0xff] %vm2072, %v2024
    %2088 = vst.msk [vmem:[#allocation14 + $0x78] sm:$0xff] %vm2072, %v2029
    %2089 = vst.msk [vmem:[#allocation14 + $0x80] sm:$0xff] %vm2072, %v2034
    %2090 = vst.msk [vmem:[#allocation14 + $0x88] sm:$0xff] %vm2072, %v2039
    %2091 = vst.msk [vmem:[#allocation14 + $0x90] sm:$0xff] %vm2072, %v2044
    %2092 = vst.msk [vmem:[#allocation14 + $0x98] sm:$0xff] %vm2072, %v2049
    %2093 = vst.msk [vmem:[#allocation14 + $0xa0] sm:$0xff] %vm2072, %v2054
    %2094 = vst.msk [vmem:[#allocation14 + $0xa8] sm:$0xff] %vm2072, %v2059
    %2095 = vst.msk [vmem:[#allocation14 + $0xb0] sm:$0xff] %vm2072, %v2064
    %2096 = vst.msk [vmem:[#allocation14 + $0xb8] sm:$0xff] %vm2072, %v2069
    // Predicated region
    $region54: #{lru_forward.1} parent=1 // pred_check
      _
    $region55: #{lru_forward.1} parent=1 // pred_check_branch
      %2098 = sbr.rel (0) target = $region57
    $region56: #{lru_forward.1} parent=1 // pred_region
      %s2100 = ssub.s32 3072, 3072
      %2101 = vsyncadd [#allocation5], %s2100
      %s2102 = sshll.u32 [#allocation14], 4
      %s2103 = int_to_ptr.vmem [resolvable:$true] %s2102
      %2108 = dma.vmem_to_hbm [thread:$0]  %s2103, 3072, %s6, [#allocation5], 128, 128, 8
    $region57: #{lru_forward.1} parent=1 // pred_fallthru
      _
    // Predicated region
    $region58: #{lru_forward.1} parent=1 // pred_check
      _
    $region59: #{lru_forward.1} parent=1 // pred_check_branch
      %2110 = sbr.rel (0) target = $region61
    $region60: #{lru_forward.1} parent=1 // pred_region
      %2111 = dma.done [#allocation5], 3072
    $region61: #{lru_forward.1} parent=1 // pred_fallthru
      _
    %2112 = vsyncpa [#allocation4], 1
    %2113 = vsyncpa [#allocation7], 1
    %2114 = vsyncpa [#allocation10], 1
    %2115 = vsyncpa [#allocation13], 1
    %2116 = vsyncpa [#allocation5], 1

</llo_original>
